<compile_context>
chip_gen: v7x
topology: tpu7x:2x2x1
jax: 0.10.0
libtpu: 0.0.40
codegen_flags: <defaults>
</compile_context>

<pallas_src>
import jax
import jax.numpy as jnp
from jax.experimental import pallas as pl
from jax.experimental.pallas import tpu as pltpu

# Logical sizes.
D_IN, H1, H2, NCLS = 784, 320, 50, 10
# Lane-padded sizes (multiples of 128).
H1P, H2P, NCLSP = 384, 128, 128


def _round_up(x, m):
    return (x + m - 1) // m * m


def _cdiv(a, b):
    return (a + b - 1) // b


def dnn_kernel(x_ref, w1_ref, b1_ref, w2_ref, b2_ref, w3_ref, b3_ref,
               mask_ref, o_ref):
    # Cast x to bf16 in-kernel (operands bf16, fp32 MXU accumulation).
    x = x_ref[...].astype(jnp.bfloat16)

    # layer2 = relu(fc1(x))
    h1 = jnp.dot(x, w1_ref[...], preferred_element_type=jnp.float32)
    h1 = jnp.maximum(h1 + b1_ref[...], 0.0).astype(jnp.bfloat16)
    # layer3 = relu(fc2(h1))
    h2 = jnp.dot(h1, w2_ref[...], preferred_element_type=jnp.float32)
    h2 = jnp.maximum(h2 + b2_ref[...], 0.0).astype(jnp.bfloat16)
    # layer4 = relu(fc3(h2))
    h3 = jnp.dot(h2, w3_ref[...], preferred_element_type=jnp.float32)
    h3 = jnp.maximum(h3 + b3_ref[...], 0.0)

    # log_softmax over class dim; additive mask (-1e30 on the 118 padded
    # lanes) keeps the max / denominator correct.
    logits = h3 + mask_ref[...]
    m = jnp.max(logits, axis=-1, keepdims=True)
    shifted = logits - m
    lse = jnp.log(jnp.sum(jnp.exp(shifted), axis=-1, keepdims=True))
    o_ref[...] = (shifted - lse).astype(o_ref.dtype)


def dnn_forward(x, kernel_params, *, tm=1024):
    """x: any shape reshapable to (-1, 784); kernel_params from prepare_params."""
    w1, b1, w2, b2, w3, b3, mask = kernel_params
    x2d = x.reshape(-1, D_IN)           # keep native dtype; cast in-kernel
    B = x2d.shape[0]

    # Guard the degenerate tiny-batch case so block rows never exceed array
    # rows (only pads when B < 8; negligible).
    B_run = B
    if B_run < 8:
        x2d = jnp.pad(x2d, ((0, 8 - B_run), (0, 0)))
        B_run = 8

    # Tile size: multiple of 8 sublanes, capped so the grid has >= 2 steps
    # whenever the batch allows it (v7x megacore); ragged last block is fine.
    half = _round_up(_cdiv(B_run, 2), 8)
    TM = max(8, min(tm, half))
    grid = (_cdiv(B_run, TM),)

    resident = lambda shape: pl.BlockSpec(shape, lambda i: (0, 0))

    w_bytes = (D_IN * H1P + H1P * H2P + H2P * NCLSP) * 2
    cost = pl.CostEstimate(
        flops=2 * B_run * (D_IN * H1P + H1P * H2P + H2P * NCLSP),
        transcendentals=B_run * (NCLSP + 1),
        bytes_accessed=(B_run * D_IN * x2d.dtype.itemsize   # x (native dtype)
                        + w_bytes                            # bf16 weights
                        + (H1P + H2P + 2 * NCLSP) * 4        # biases + mask
                        + B_run * NCLSP * 4),                # fp32 output
    )

    out_padded = pl.pallas_call(
        dnn_kernel,
        out_shape=jax.ShapeDtypeStruct((B_run, NCLSP), jnp.float32),
        grid=grid,
        in_specs=[
            pl.BlockSpec((TM, D_IN), lambda i: (i, 0)),    # x tile (pipelined)
            resident((D_IN, H1P)), resident((1, H1P)),     # fc1
            resident((H1P, H2P)), resident((1, H2P)),      # fc2
            resident((H2P, NCLSP)), resident((1, NCLSP)),  # fc3
            resident((1, NCLSP)),                          # class-lane mask
        ],
        out_specs=pl.BlockSpec((TM, NCLSP), lambda i: (i, 0)),
        compiler_params=pltpu.CompilerParams(
            dimension_semantics=("parallel",),
            vmem_limit_bytes=48 * 1024 * 1024),
        cost_estimate=cost,
    )(x2d, w1, b1, w2, b2, w3, b3, mask)

    return out_padded[:B, :NCLS]


def init_params(key):
    """Deterministic init matching nn.Linear; weights stored as (in, out), fp32."""
    ks = jax.random.split(key, 6)

    def linear(kw, kb, fan_in, fan_out):
        bound = 1.0 / jnp.sqrt(fan_in)
        w = jax.random.uniform(kw, (fan_in, fan_out), jnp.float32, -bound, bound)
        b = jax.random.uniform(kb, (1, fan_out), jnp.float32, -bound, bound)
        return w, b

    w1, b1 = linear(ks[0], ks[1], D_IN, H1)
    w2, b2 = linear(ks[2], ks[3], H1, H2)
    w3, b3 = linear(ks[4], ks[5], H2, NCLS)
    return (w1, b1, w2, b2, w3, b3)


def prepare_params(params):
    """Zero-pad feature dims to 128-lane multiples; weights bf16, biases fp32.

    Also builds the (1, NCLSP) additive log-softmax mask (0 for real classes,
    -1e30 for padded lanes) so the kernel closes over no constants.
    """
    w1, b1, w2, b2, w3, b3 = params

    def pad_w(w, rows, cols):
        return jnp.pad(w, ((0, rows - w.shape[0]), (0, cols - w.shape[1]))
                       ).astype(jnp.bfloat16)

    def pad_b(b, cols):
        return jnp.pad(b, ((0, 0), (0, cols - b.shape[1]))).astype(jnp.float32)

    mask = jnp.where(jnp.arange(NCLSP) < NCLS, 0.0, -1e30)
    mask = mask.astype(jnp.float32).reshape(1, NCLSP)

    return (pad_w(w1, D_IN, H1P), pad_b(b1, H1P),
            pad_w(w2, H1P, H2P), pad_b(b2, H2P),
            pad_w(w3, H2P, NCLSP), pad_b(b3, NCLSP),
            mask)


def reference_forward(x, params):
    """Pure-JAX reference with the same bf16-operand / fp32-accumulate recipe."""
    w1, b1, w2, b2, w3, b3 = params
    h = x.reshape(-1, D_IN).astype(jnp.bfloat16)
    h = jnp.maximum(jnp.dot(h, w1.astype(jnp.bfloat16),
                            preferred_element_type=jnp.float32) + b1, 0.0)
    h = h.astype(jnp.bfloat16)
    h = jnp.maximum(jnp.dot(h, w2.astype(jnp.bfloat16),
                            preferred_element_type=jnp.float32) + b2, 0.0)
    h = h.astype(jnp.bfloat16)
    h = jnp.maximum(jnp.dot(h, w3.astype(jnp.bfloat16),
                            preferred_element_type=jnp.float32) + b3, 0.0)
    return jax.nn.log_softmax(h, axis=-1)


if __name__ == "__main__":
    key = jax.random.PRNGKey(0)
    kx, kp = jax.random.split(key)
    # Small MNIST-like batch: NCHW (4, 1, 28, 28) -> view(-1, 784)
    x = jax.random.normal(kx, (4, 1, 28, 28), jnp.float32)
    params = init_params(kp)
    kernel_params = prepare_params(params)

    out = dnn_forward(x, kernel_params)
    out = jax.block_until_ready(out)

    ref = reference_forward(x, params)
    assert out.shape == (4, NCLS), out.shape
    assert jnp.allclose(out, ref, atol=2e-3, rtol=2e-3), "mismatch vs reference"
    print("KERNEL_OK")
</pallas_src>

<mosaic_0001>
module attributes {stable_mosaic.version = 11 : i64} {
  func.func @dnn_kernel(%arg0: i32, %arg1: memref<8x784xf32, #tpu.memory_space<vmem>>, %arg2: memref<784x384xbf16, #tpu.memory_space<vmem>>, %arg3: memref<1x384xf32, #tpu.memory_space<vmem>>, %arg4: memref<384x128xbf16, #tpu.memory_space<vmem>>, %arg5: memref<1x128xf32, #tpu.memory_space<vmem>>, %arg6: memref<128x128xbf16, #tpu.memory_space<vmem>>, %arg7: memref<1x128xf32, #tpu.memory_space<vmem>>, %arg8: memref<1x128xf32, #tpu.memory_space<vmem>>, %arg9: memref<8x128xf32, #tpu.memory_space<vmem>>) attributes {dimension_semantics = [#tpu.dimension_semantics<parallel>], iteration_bounds = array<i64: 1>, scalar_prefetch = 0 : i64, scratch_operands = 0 : i64, tpu.core_type = #tpu.core_type<tc>, window_params = [{transform_indices = @transform_0, window_bounds = array<i64: 8, 784>}, {pipeline_mode = #tpu.pipeline_mode<synchronous>, transform_indices = @transform_1, window_bounds = array<i64: 784, 384>}, {pipeline_mode = #tpu.pipeline_mode<synchronous>, transform_indices = @transform_2, window_bounds = array<i64: 1, 384>}, {pipeline_mode = #tpu.pipeline_mode<synchronous>, transform_indices = @transform_3, window_bounds = array<i64: 384, 128>}, {pipeline_mode = #tpu.pipeline_mode<synchronous>, transform_indices = @transform_4, window_bounds = array<i64: 1, 128>}, {pipeline_mode = #tpu.pipeline_mode<synchronous>, transform_indices = @transform_5, window_bounds = array<i64: 128, 128>}, {pipeline_mode = #tpu.pipeline_mode<synchronous>, transform_indices = @transform_6, window_bounds = array<i64: 1, 128>}, {pipeline_mode = #tpu.pipeline_mode<synchronous>, transform_indices = @transform_7, window_bounds = array<i64: 1, 128>}, {transform_indices = @transform_8, window_bounds = array<i64: 8, 128>}]} {
    %c0 = arith.constant 0 : index
    %c0_0 = arith.constant 0 : index
    %0 = vector.load %arg1[%c0, %c0_0] : memref<8x784xf32, #tpu.memory_space<vmem>>, vector<8x784xf32>
    %1 = arith.truncf %0 : vector<8x784xf32> to vector<8x784xbf16>
    %c0_1 = arith.constant 0 : index
    %c0_2 = arith.constant 0 : index
    %2 = vector.load %arg2[%c0_1, %c0_2] : memref<784x384xbf16, #tpu.memory_space<vmem>>, vector<784x384xbf16>
    %cst = arith.constant dense<0.000000e+00> : vector<8x384xf32>
    %3 = tpu.matmul %1, %2, %cst {dimension_numbers = #tpu.dot_dimension_numbers<[1], [0], [0], [1], [0, 0, 1, 1], [], []>} : vector<8x784xbf16>, vector<784x384xbf16>, vector<8x384xf32> -> vector<8x384xf32>
    %c0_3 = arith.constant 0 : index
    %c0_4 = arith.constant 0 : index
    %4 = vector.load %arg3[%c0_3, %c0_4] : memref<1x384xf32, #tpu.memory_space<vmem>>, vector<1x384xf32>
    %5 = vector.broadcast %4 : vector<1x384xf32> to vector<8x384xf32>
    %6 = arith.addf %3, %5 : vector<8x384xf32>
    %cst_5 = arith.constant 0.000000e+00 : f32
    %7 = vector.broadcast %cst_5 : f32 to vector<8x384xf32>
    %8 = arith.maximumf %6, %7 : vector<8x384xf32>
    %9 = arith.truncf %8 : vector<8x384xf32> to vector<8x384xbf16>
    %c0_6 = arith.constant 0 : index
    %c0_7 = arith.constant 0 : index
    %10 = vector.load %arg4[%c0_6, %c0_7] : memref<384x128xbf16, #tpu.memory_space<vmem>>, vector<384x128xbf16>
    %cst_8 = arith.constant dense<0.000000e+00> : vector<8x128xf32>
    %11 = tpu.matmul %9, %10, %cst_8 {dimension_numbers = #tpu.dot_dimension_numbers<[1], [0], [0], [1], [0, 0, 1, 1], [], []>} : vector<8x384xbf16>, vector<384x128xbf16>, vector<8x128xf32> -> vector<8x128xf32>
    %c0_9 = arith.constant 0 : index
    %c0_10 = arith.constant 0 : index
    %12 = vector.load %arg5[%c0_9, %c0_10] : memref<1x128xf32, #tpu.memory_space<vmem>>, vector<1x128xf32>
    %13 = vector.broadcast %12 : vector<1x128xf32> to vector<8x128xf32>
    %14 = arith.addf %11, %13 : vector<8x128xf32>
    %cst_11 = arith.constant 0.000000e+00 : f32
    %15 = vector.broadcast %cst_11 : f32 to vector<8x128xf32>
    %16 = arith.maximumf %14, %15 : vector<8x128xf32>
    %17 = arith.truncf %16 : vector<8x128xf32> to vector<8x128xbf16>
    %c0_12 = arith.constant 0 : index
    %c0_13 = arith.constant 0 : index
    %18 = vector.load %arg6[%c0_12, %c0_13] : memref<128x128xbf16, #tpu.memory_space<vmem>>, vector<128x128xbf16>
    %cst_14 = arith.constant dense<0.000000e+00> : vector<8x128xf32>
    %19 = tpu.matmul %17, %18, %cst_14 {dimension_numbers = #tpu.dot_dimension_numbers<[1], [0], [0], [1], [0, 0, 1, 1], [], []>} : vector<8x128xbf16>, vector<128x128xbf16>, vector<8x128xf32> -> vector<8x128xf32>
    %c0_15 = arith.constant 0 : index
    %c0_16 = arith.constant 0 : index
    %20 = vector.load %arg7[%c0_15, %c0_16] : memref<1x128xf32, #tpu.memory_space<vmem>>, vector<1x128xf32>
    %21 = vector.broadcast %20 : vector<1x128xf32> to vector<8x128xf32>
    %22 = arith.addf %19, %21 : vector<8x128xf32>
    %cst_17 = arith.constant 0.000000e+00 : f32
    %23 = vector.broadcast %cst_17 : f32 to vector<8x128xf32>
    %24 = arith.maximumf %22, %23 : vector<8x128xf32>
    %c0_18 = arith.constant 0 : index
    %c0_19 = arith.constant 0 : index
    %25 = vector.load %arg8[%c0_18, %c0_19] : memref<1x128xf32, #tpu.memory_space<vmem>>, vector<1x128xf32>
    %26 = vector.broadcast %25 : vector<1x128xf32> to vector<8x128xf32>
    %27 = arith.addf %24, %26 : vector<8x128xf32>
    %cst_20 = arith.constant dense<0xFF800000> : vector<8xf32>
    %28 = vector.multi_reduction <maximumf>, %27, %cst_20 [1] : vector<8x128xf32> to vector<8xf32>
    %29 = vector.shape_cast %28 : vector<8xf32> to vector<8x1xf32>
    %30 = vector.broadcast %29 : vector<8x1xf32> to vector<8x128xf32>
    %31 = arith.subf %27, %30 : vector<8x128xf32>
    %32 = math.exp %31 : vector<8x128xf32>
    %cst_21 = arith.constant dense<0.000000e+00> : vector<8xf32>
    %33 = vector.multi_reduction <add>, %32, %cst_21 [1] : vector<8x128xf32> to vector<8xf32>
    %34 = vector.shape_cast %33 : vector<8xf32> to vector<8x1xf32>
    %35 = math.log %34 : vector<8x1xf32>
    %36 = vector.broadcast %35 : vector<8x1xf32> to vector<8x128xf32>
    %37 = arith.subf %31, %36 : vector<8x128xf32>
    %c0_22 = arith.constant 0 : index
    %c0_23 = arith.constant 0 : index
    %38 = vector.load %arg9[%c0_22, %c0_23] : memref<8x128xf32, #tpu.memory_space<vmem>>, vector<8x128xf32>
    tpu.vector_store %arg9[%c0_22, %c0_23], %37 {strides = array<i32>} : memref<8x128xf32, #tpu.memory_space<vmem>>, vector<8x128xf32>,
    return
  }
  func.func @transform_0(%arg0: i32) -> (i32, i32) {
    %c0_i32 = arith.constant 0 : i32
    %c0_i32_0 = arith.constant 0 : i32
    return %arg0, %c0_i32 : i32, i32
  }
  func.func @transform_1(%arg0: i32) -> (i32, i32) {
    %c0_i32 = arith.constant 0 : i32
    %c0_i32_0 = arith.constant 0 : i32
    %c0_i32_1 = arith.constant 0 : i32
    return %c0_i32, %c0_i32_0 : i32, i32
  }
  func.func @transform_2(%arg0: i32) -> (i32, i32) {
    %c0_i32 = arith.constant 0 : i32
    %c0_i32_0 = arith.constant 0 : i32
    %c0_i32_1 = arith.constant 0 : i32
    return %c0_i32, %c0_i32_0 : i32, i32
  }
  func.func @transform_3(%arg0: i32) -> (i32, i32) {
    %c0_i32 = arith.constant 0 : i32
    %c0_i32_0 = arith.constant 0 : i32
    %c0_i32_1 = arith.constant 0 : i32
    return %c0_i32, %c0_i32_0 : i32, i32
  }
  func.func @transform_4(%arg0: i32) -> (i32, i32) {
    %c0_i32 = arith.constant 0 : i32
    %c0_i32_0 = arith.constant 0 : i32
    %c0_i32_1 = arith.constant 0 : i32
    return %c0_i32, %c0_i32_0 : i32, i32
  }
  func.func @transform_5(%arg0: i32) -> (i32, i32) {
    %c0_i32 = arith.constant 0 : i32
    %c0_i32_0 = arith.constant 0 : i32
    %c0_i32_1 = arith.constant 0 : i32
    return %c0_i32, %c0_i32_0 : i32, i32
  }
  func.func @transform_6(%arg0: i32) -> (i32, i32) {
    %c0_i32 = arith.constant 0 : i32
    %c0_i32_0 = arith.constant 0 : i32
    %c0_i32_1 = arith.constant 0 : i32
    return %c0_i32, %c0_i32_0 : i32, i32
  }
  func.func @transform_7(%arg0: i32) -> (i32, i32) {
    %c0_i32 = arith.constant 0 : i32
    %c0_i32_0 = arith.constant 0 : i32
    %c0_i32_1 = arith.constant 0 : i32
    return %c0_i32, %c0_i32_0 : i32, i32
  }
  func.func @transform_8(%arg0: i32) -> (i32, i32) {
    %c0_i32 = arith.constant 0 : i32
    %c0_i32_0 = arith.constant 0 : i32
    return %arg0, %c0_i32 : i32, i32
  }
}

</mosaic_0001>

<llo_original>
// kernel: tpu_custom_call.1
$region0: #{tpu_custom_call.1}
  #allocation0 [shape = 'u32[]', space=smem, size = 0x4, offset = 0x4, fixed_abs, tag = 'smem constant byte address 0x4 - core index']
  #allocation1 [shape = 'u32[144,128]{1,0:T(1,128)}', space=vmem, size = 0x12000, scoped, tag = 'internal scratch']
  %s0 = inlined_call_operand.hbm [shape: f32[8,784], index: 0, kind: input, shape index: {}]
  %s1 = inlined_call_operand.hbm [shape: bf16[784,384], index: 1, kind: input, shape index: {}]
  %s2 = inlined_call_operand.vmem [shape: f32[1,384], index: 2, kind: input, shape index: {}]
  %s3 = inlined_call_operand.hbm [shape: bf16[384,128], index: 3, kind: input, shape index: {}]
  %s4 = inlined_call_operand.vmem [shape: f32[1,128], index: 4, kind: input, shape index: {}]
  %s5 = inlined_call_operand.hbm [shape: bf16[128,128], index: 5, kind: input, shape index: {}]
  %s6 = inlined_call_operand.vmem [shape: f32[1,128], index: 6, kind: input, shape index: {}]
  %s7 = inlined_call_operand.vmem [shape: f32[1,128], index: 7, kind: input, shape index: {}]
  %s8 = inlined_call_operand.hbm [shape: f32[8,128], index: 8, kind: output, shape index: {}]
  %s9 = sld [smem:[#allocation0]]
  $region58: #{tpu_custom_call.1} parent=0
    _
  %s11 = ssub.s32 1, %s9
  %s12 = scalar_select 0, %s11, %s9
  $region1: #{tpu_custom_call.1} parent=0
    #allocation2 [shape = 'u8[28672]{0}', space=vmem, size = 0x7000, scoped, tag = 'input window, operand 0, single buffered']
    #allocation3 [shape = 's32[1]{0}', space=sflag, size = 0x4, scoped, tag = 'scoped memory for tpu_custom_call.1']
    #allocation4 [shape = 's32[1]{0}', space=sflag, size = 0x4, scoped, tag = 'scoped memory for tpu_custom_call.1']
    #allocation5 [shape = 'u8[602112]{0}', space=vmem, size = 0x93000, scoped, tag = 'input window, operand 1, single buffered']
    #allocation6 [shape = 's32[1]{0}', space=sflag, size = 0x4, scoped, tag = 'scoped memory for tpu_custom_call.1']
    #allocation7 [shape = 'u8[98304]{0}', space=vmem, size = 0x18000, scoped, tag = 'input window, operand 3, single buffered']
    #allocation8 [shape = 'u8[32768]{0}', space=vmem, size = 0x8000, scoped, tag = 'input window, operand 5, single buffered']
    #allocation9 [shape = 's32[1]{0}', space=sflag, size = 0x4, scoped, tag = 'scoped memory for tpu_custom_call.1']
    #allocation10 [shape = 'u8[4096]{0}', space=vmem, size = 0x1000, scoped, tag = 'output window, operand 0, single buffered']
    %13 = vsyncpa [#allocation3], 0
    %14 = vsyncpa [#allocation6], 0
    %15 = vsyncpa [#allocation9], 0
    %16 = vsyncpa [#allocation4], 0
    // Predicated region
    $region2: #{tpu_custom_call.1} parent=1 // pred_check
      _
    $region3: #{tpu_custom_call.1} parent=1 // pred_check_branch
      %18 = sbr.rel (0) target = $region5
    $region4: #{tpu_custom_call.1} parent=1 // pred_region
      %s20 = ssub.s32 896, 896
      %21 = vsyncadd [#allocation3], %s20
      %s23 = sshll.u32 [#allocation2], 4
      %s24 = int_to_ptr.vmem [resolvable:$true] %s23
      %26 = dma.hbm_to_vmem [thread:$0]  %s0, 896, %s24, [#allocation3]
    $region5: #{tpu_custom_call.1} parent=1 // pred_fallthru
      _
    // Predicated region
    $region6: #{tpu_custom_call.1} parent=1 // pred_check
      _
    $region7: #{tpu_custom_call.1} parent=1 // pred_check_branch
      %28 = sbr.rel (0) target = $region9
    $region8: #{tpu_custom_call.1} parent=1 // pred_region
      %s30 = ssub.s32 18816, 18816
      %31 = vsyncadd [#allocation6], %s30
      %s32 = sshll.u32 [#allocation5], 4
      %s33 = int_to_ptr.vmem [resolvable:$true] %s32
      %38 = dma.hbm_to_vmem [thread:$0]  %s1, 18816, %s33, [#allocation6], 192, 192, 12
    $region9: #{tpu_custom_call.1} parent=1 // pred_fallthru
      _
    // Predicated region
    $region10: #{tpu_custom_call.1} parent=1 // pred_check
      _
    $region11: #{tpu_custom_call.1} parent=1 // pred_check_branch
      %40 = sbr.rel (0) target = $region13
    $region12: #{tpu_custom_call.1} parent=1 // pred_region
      _
    $region13: #{tpu_custom_call.1} parent=1 // pred_fallthru
      _
    // Predicated region
    $region14: #{tpu_custom_call.1} parent=1 // pred_check
      _
    $region15: #{tpu_custom_call.1} parent=1 // pred_check_branch
      %42 = sbr.rel (0) target = $region17
    $region16: #{tpu_custom_call.1} parent=1 // pred_region
      %s44 = ssub.s32 3072, 3072
      %45 = vsyncadd [#allocation6], %s44
      %s46 = sshll.u32 [#allocation7], 4
      %s47 = int_to_ptr.vmem [resolvable:$true] %s46
      %52 = dma.hbm_to_vmem [thread:$0]  %s3, 3072, %s47, [#allocation6], 64, 64, 4
    $region17: #{tpu_custom_call.1} parent=1 // pred_fallthru
      _
    // Predicated region
    $region18: #{tpu_custom_call.1} parent=1 // pred_check
      _
    $region19: #{tpu_custom_call.1} parent=1 // pred_check_branch
      %54 = sbr.rel (0) target = $region21
    $region20: #{tpu_custom_call.1} parent=1 // pred_region
      _
    $region21: #{tpu_custom_call.1} parent=1 // pred_fallthru
      _
    // Predicated region
    $region22: #{tpu_custom_call.1} parent=1 // pred_check
      _
    $region23: #{tpu_custom_call.1} parent=1 // pred_check_branch
      %56 = sbr.rel (0) target = $region25
    $region24: #{tpu_custom_call.1} parent=1 // pred_region
      %s58 = ssub.s32 1024, 1024
      %59 = vsyncadd [#allocation9], %s58
      %s60 = sshll.u32 [#allocation8], 4
      %s61 = int_to_ptr.vmem [resolvable:$true] %s60
      %66 = dma.hbm_to_vmem [thread:$0]  %s5, 1024, %s61, [#allocation9], 64, 64, 4
    $region25: #{tpu_custom_call.1} parent=1 // pred_fallthru
      _
    // Predicated region
    $region26: #{tpu_custom_call.1} parent=1 // pred_check
      _
    $region27: #{tpu_custom_call.1} parent=1 // pred_check_branch
      %68 = sbr.rel (0) target = $region29
    $region28: #{tpu_custom_call.1} parent=1 // pred_region
      _
    $region29: #{tpu_custom_call.1} parent=1 // pred_fallthru
      _
    // Predicated region
    $region30: #{tpu_custom_call.1} parent=1 // pred_check
      _
    $region31: #{tpu_custom_call.1} parent=1 // pred_check_branch
      %70 = sbr.rel (0) target = $region33
    $region32: #{tpu_custom_call.1} parent=1 // pred_region
      _
    $region33: #{tpu_custom_call.1} parent=1 // pred_fallthru
      _
    // Predicated region
    $region34: #{tpu_custom_call.1} parent=1 // pred_check
      _
    $region35: #{tpu_custom_call.1} parent=1 // pred_check_branch
      %72 = sbr.rel (0) target = $region37
    $region36: #{tpu_custom_call.1} parent=1 // pred_region
      %73 = dma.done [#allocation3], 896
    $region37: #{tpu_custom_call.1} parent=1 // pred_fallthru
      _
    // Predicated region
    $region38: #{tpu_custom_call.1} parent=1 // pred_check
      _
    $region39: #{tpu_custom_call.1} parent=1 // pred_check_branch
      %75 = sbr.rel (0) target = $region41
    $region40: #{tpu_custom_call.1} parent=1 // pred_region
      %76 = dma.done [#allocation6], 18816
    $region41: #{tpu_custom_call.1} parent=1 // pred_fallthru
      _
    // Predicated region
    $region42: #{tpu_custom_call.1} parent=1 // pred_check
      _
    $region43: #{tpu_custom_call.1} parent=1 // pred_check_branch
      %78 = sbr.rel (0) target = $region45
    $region44: #{tpu_custom_call.1} parent=1 // pred_region
      %79 = dma.done [#allocation6], 3072
    $region45: #{tpu_custom_call.1} parent=1 // pred_fallthru
      _
    // Predicated region
    $region46: #{tpu_custom_call.1} parent=1 // pred_check
      _
    $region47: #{tpu_custom_call.1} parent=1 // pred_check_branch
      %81 = sbr.rel (0) target = $region49
    $region48: #{tpu_custom_call.1} parent=1 // pred_region
      %82 = dma.done [#allocation9], 1024
    $region49: #{tpu_custom_call.1} parent=1 // pred_fallthru
      _
    %v84 = vld [vmem:[#allocation2] sm:$0xff]
    %v85 = vld [vmem:[#allocation2 + $0x8] sm:$0xff]
    %v86 = vld [vmem:[#allocation2 + $0x10] sm:$0xff]
    %v87 = vld [vmem:[#allocation2 + $0x18] sm:$0xff]
    %v88 = vld [vmem:[#allocation2 + $0x20] sm:$0xff]
    %v89 = vld [vmem:[#allocation2 + $0x28] sm:$0xff]
    %v90 = vld [vmem:[#allocation2 + $0x30] sm:$0xff]
    %v91 = vpack.c.bf16 %v84, %v84
    %v92 = vpack.c.bf16 %v85, %v85
    %v93 = vpack.c.bf16 %v86, %v86
    %v94 = vpack.c.bf16 %v87, %v87
    %v95 = vpack.c.bf16 %v88, %v88
    %v96 = vpack.c.bf16 %v89, %v89
    %v97 = vpack.c.bf16 %v90, %v90
    %v98 = vld [vmem:[#allocation5] sm:$0xff]
    %v99 = vld [vmem:[#allocation5 + $0x8] sm:$0xf]
    %v100 = vld [vmem:[#allocation5 + $0xc] sm:$0xff]
    %v101 = vld [vmem:[#allocation5 + $0x14] sm:$0xf]
    %v102 = vld [vmem:[#allocation5 + $0x18] sm:$0xff]
    %v103 = vld [vmem:[#allocation5 + $0x20] sm:$0xf]
    %v104 = vld [vmem:[#allocation5 + $0x24] sm:$0xff]
    %v105 = vld [vmem:[#allocation5 + $0x2c] sm:$0xf]
    %v106 = vld [vmem:[#allocation5 + $0x30] sm:$0xff]
    %v107 = vld [vmem:[#allocation5 + $0x38] sm:$0xf]
    %v108 = vld [vmem:[#allocation5 + $0x3c] sm:$0xff]
    %v109 = vld [vmem:[#allocation5 + $0x44] sm:$0xf]
    %v110 = vld [vmem:[#allocation5 + $0x48] sm:$0xff]
    %v111 = vld [vmem:[#allocation5 + $0x50] sm:$0xf]
    %v112 = vld [vmem:[#allocation5 + $0x54] sm:$0xff]
    %v113 = vld [vmem:[#allocation5 + $0x5c] sm:$0xf]
    %v114 = vld [vmem:[#allocation5 + $0x60] sm:$0xff]
    %v115 = vld [vmem:[#allocation5 + $0x68] sm:$0xf]
    %v116 = vld [vmem:[#allocation5 + $0x6c] sm:$0xff]
    %v117 = vld [vmem:[#allocation5 + $0x74] sm:$0xf]
    %v118 = vld [vmem:[#allocation5 + $0x78] sm:$0xff]
    %v119 = vld [vmem:[#allocation5 + $0x80] sm:$0xf]
    %v120 = vld [vmem:[#allocation5 + $0x84] sm:$0xff]
    %v121 = vld [vmem:[#allocation5 + $0x8c] sm:$0xf]
    %v122 = vld [vmem:[#allocation5 + $0x90] sm:$0xff]
    %v123 = vld [vmem:[#allocation5 + $0x98] sm:$0xf]
    %v124 = vld [vmem:[#allocation5 + $0x9c] sm:$0xff]
    %v125 = vld [vmem:[#allocation5 + $0xa4] sm:$0xf]
    %v126 = vld [vmem:[#allocation5 + $0xa8] sm:$0xff]
    %v127 = vld [vmem:[#allocation5 + $0xb0] sm:$0xf]
    %v128 = vld [vmem:[#allocation5 + $0xb4] sm:$0xff]
    %v129 = vld [vmem:[#allocation5 + $0xbc] sm:$0xf]
    %v130 = vld [vmem:[#allocation5 + $0xc0] sm:$0xff]
    %v131 = vld [vmem:[#allocation5 + $0xc8] sm:$0xf]
    %v132 = vld [vmem:[#allocation5 + $0xcc] sm:$0xff]
    %v133 = vld [vmem:[#allocation5 + $0xd4] sm:$0xf]
    %v134 = vld [vmem:[#allocation5 + $0xd8] sm:$0xff]
    %v135 = vld [vmem:[#allocation5 + $0xe0] sm:$0xf]
    %v136 = vld [vmem:[#allocation5 + $0xe4] sm:$0xff]
    %v137 = vld [vmem:[#allocation5 + $0xec] sm:$0xf]
    %v138 = vld [vmem:[#allocation5 + $0xf0] sm:$0xff]
    %v139 = vld [vmem:[#allocation5 + $0xf8] sm:$0xf]
    %v140 = vld [vmem:[#allocation5 + $0xfc] sm:$0xff]
    %v141 = vld [vmem:[#allocation5 + $0x104] sm:$0xf]
    %v142 = vld [vmem:[#allocation5 + $0x108] sm:$0xff]
    %v143 = vld [vmem:[#allocation5 + $0x110] sm:$0xf]
    %v144 = vld [vmem:[#allocation5 + $0x114] sm:$0xff]
    %v145 = vld [vmem:[#allocation5 + $0x11c] sm:$0xf]
    %v146 = vld [vmem:[#allocation5 + $0x120] sm:$0xff]
    %v147 = vld [vmem:[#allocation5 + $0x128] sm:$0xf]
    %v148 = vld [vmem:[#allocation5 + $0x12c] sm:$0xff]
    %v149 = vld [vmem:[#allocation5 + $0x134] sm:$0xf]
    %v150 = vld [vmem:[#allocation5 + $0x138] sm:$0xff]
    %v151 = vld [vmem:[#allocation5 + $0x140] sm:$0xf]
    %v152 = vld [vmem:[#allocation5 + $0x144] sm:$0xff]
    %v153 = vld [vmem:[#allocation5 + $0x14c] sm:$0xf]
    %v154 = vld [vmem:[#allocation5 + $0x150] sm:$0xff]
    %v155 = vld [vmem:[#allocation5 + $0x158] sm:$0xf]
    %v156 = vld [vmem:[#allocation5 + $0x15c] sm:$0xff]
    %v157 = vld [vmem:[#allocation5 + $0x164] sm:$0xf]
    %v158 = vld [vmem:[#allocation5 + $0x168] sm:$0xff]
    %v159 = vld [vmem:[#allocation5 + $0x170] sm:$0xf]
    %v160 = vld [vmem:[#allocation5 + $0x174] sm:$0xff]
    %v161 = vld [vmem:[#allocation5 + $0x17c] sm:$0xf]
    %v162 = vld [vmem:[#allocation5 + $0x180] sm:$0xff]
    %v163 = vld [vmem:[#allocation5 + $0x188] sm:$0xf]
    %v164 = vld [vmem:[#allocation5 + $0x18c] sm:$0xff]
    %v165 = vld [vmem:[#allocation5 + $0x194] sm:$0xf]
    %v166 = vld [vmem:[#allocation5 + $0x198] sm:$0xff]
    %v167 = vld [vmem:[#allocation5 + $0x1a0] sm:$0xf]
    %v168 = vld [vmem:[#allocation5 + $0x1a4] sm:$0xff]
    %v169 = vld [vmem:[#allocation5 + $0x1ac] sm:$0xf]
    %v170 = vld [vmem:[#allocation5 + $0x1b0] sm:$0xff]
    %v171 = vld [vmem:[#allocation5 + $0x1b8] sm:$0xf]
    %v172 = vld [vmem:[#allocation5 + $0x1bc] sm:$0xff]
    %v173 = vld [vmem:[#allocation5 + $0x1c4] sm:$0xf]
    %v174 = vld [vmem:[#allocation5 + $0x1c8] sm:$0xff]
    %v175 = vld [vmem:[#allocation5 + $0x1d0] sm:$0xf]
    %v176 = vld [vmem:[#allocation5 + $0x1d4] sm:$0xff]
    %v177 = vld [vmem:[#allocation5 + $0x1dc] sm:$0xf]
    %v178 = vld [vmem:[#allocation5 + $0x1e0] sm:$0xff]
    %v179 = vld [vmem:[#allocation5 + $0x1e8] sm:$0xf]
    %v180 = vld [vmem:[#allocation5 + $0x1ec] sm:$0xff]
    %v181 = vld [vmem:[#allocation5 + $0x1f4] sm:$0xf]
    %v182 = vld [vmem:[#allocation5 + $0x1f8] sm:$0xff]
    %v183 = vld [vmem:[#allocation5 + $0x200] sm:$0xf]
    %v184 = vld [vmem:[#allocation5 + $0x204] sm:$0xff]
    %v185 = vld [vmem:[#allocation5 + $0x20c] sm:$0xf]
    %v186 = vld [vmem:[#allocation5 + $0x210] sm:$0xff]
    %v187 = vld [vmem:[#allocation5 + $0x218] sm:$0xf]
    %v188 = vld [vmem:[#allocation5 + $0x21c] sm:$0xff]
    %v189 = vld [vmem:[#allocation5 + $0x224] sm:$0xf]
    %v190 = vld [vmem:[#allocation5 + $0x228] sm:$0xff]
    %v191 = vld [vmem:[#allocation5 + $0x230] sm:$0xf]
    %v192 = vld [vmem:[#allocation5 + $0x234] sm:$0xff]
    %v193 = vld [vmem:[#allocation5 + $0x23c] sm:$0xf]
    %v194 = vld [vmem:[#allocation5 + $0x240] sm:$0xff]
    %v195 = vld [vmem:[#allocation5 + $0x248] sm:$0xf]
    %v196 = vld [vmem:[#allocation5 + $0x24c] sm:$0xff]
    %v197 = vld [vmem:[#allocation5 + $0x254] sm:$0xf]
    %v198 = vld [vmem:[#allocation5 + $0x258] sm:$0xff]
    %v199 = vld [vmem:[#allocation5 + $0x260] sm:$0xf]
    %v200 = vld [vmem:[#allocation5 + $0x264] sm:$0xff]
    %v201 = vld [vmem:[#allocation5 + $0x26c] sm:$0xf]
    %v202 = vld [vmem:[#allocation5 + $0x270] sm:$0xff]
    %v203 = vld [vmem:[#allocation5 + $0x278] sm:$0xf]
    %v204 = vld [vmem:[#allocation5 + $0x27c] sm:$0xff]
    %v205 = vld [vmem:[#allocation5 + $0x284] sm:$0xf]
    %v206 = vld [vmem:[#allocation5 + $0x288] sm:$0xff]
    %v207 = vld [vmem:[#allocation5 + $0x290] sm:$0xf]
    %v208 = vld [vmem:[#allocation5 + $0x294] sm:$0xff]
    %v209 = vld [vmem:[#allocation5 + $0x29c] sm:$0xf]
    %v210 = vld [vmem:[#allocation5 + $0x2a0] sm:$0xff]
    %v211 = vld [vmem:[#allocation5 + $0x2a8] sm:$0xf]
    %v212 = vld [vmem:[#allocation5 + $0x2ac] sm:$0xff]
    %v213 = vld [vmem:[#allocation5 + $0x2b4] sm:$0xf]
    %v214 = vld [vmem:[#allocation5 + $0x2b8] sm:$0xff]
    %v215 = vld [vmem:[#allocation5 + $0x2c0] sm:$0xf]
    %v216 = vld [vmem:[#allocation5 + $0x2c4] sm:$0xff]
    %v217 = vld [vmem:[#allocation5 + $0x2cc] sm:$0xf]
    %v218 = vld [vmem:[#allocation5 + $0x2d0] sm:$0xff]
    %v219 = vld [vmem:[#allocation5 + $0x2d8] sm:$0xf]
    %v220 = vld [vmem:[#allocation5 + $0x2dc] sm:$0xff]
    %v221 = vld [vmem:[#allocation5 + $0x2e4] sm:$0xf]
    %v222 = vld [vmem:[#allocation5 + $0x2e8] sm:$0xff]
    %v223 = vld [vmem:[#allocation5 + $0x2f0] sm:$0xf]
    %v224 = vld [vmem:[#allocation5 + $0x2f4] sm:$0xff]
    %v225 = vld [vmem:[#allocation5 + $0x2fc] sm:$0xf]
    %v226 = vld [vmem:[#allocation5 + $0x300] sm:$0xff]
    %v227 = vld [vmem:[#allocation5 + $0x308] sm:$0xf]
    %v228 = vld [vmem:[#allocation5 + $0x30c] sm:$0xff]
    %v229 = vld [vmem:[#allocation5 + $0x314] sm:$0xf]
    %v230 = vld [vmem:[#allocation5 + $0x318] sm:$0xff]
    %v231 = vld [vmem:[#allocation5 + $0x320] sm:$0xf]
    %v232 = vld [vmem:[#allocation5 + $0x324] sm:$0xff]
    %v233 = vld [vmem:[#allocation5 + $0x32c] sm:$0xf]
    %v234 = vld [vmem:[#allocation5 + $0x330] sm:$0xff]
    %v235 = vld [vmem:[#allocation5 + $0x338] sm:$0xf]
    %v236 = vld [vmem:[#allocation5 + $0x33c] sm:$0xff]
    %v237 = vld [vmem:[#allocation5 + $0x344] sm:$0xf]
    %v238 = vld [vmem:[#allocation5 + $0x348] sm:$0xff]
    %v239 = vld [vmem:[#allocation5 + $0x350] sm:$0xf]
    %v240 = vld [vmem:[#allocation5 + $0x354] sm:$0xff]
    %v241 = vld [vmem:[#allocation5 + $0x35c] sm:$0xf]
    %v242 = vld [vmem:[#allocation5 + $0x360] sm:$0xff]
    %v243 = vld [vmem:[#allocation5 + $0x368] sm:$0xf]
    %v244 = vld [vmem:[#allocation5 + $0x36c] sm:$0xff]
    %v245 = vld [vmem:[#allocation5 + $0x374] sm:$0xf]
    %v246 = vld [vmem:[#allocation5 + $0x378] sm:$0xff]
    %v247 = vld [vmem:[#allocation5 + $0x380] sm:$0xf]
    %v248 = vld [vmem:[#allocation5 + $0x384] sm:$0xff]
    %v249 = vld [vmem:[#allocation5 + $0x38c] sm:$0xf]
    %v250 = vld [vmem:[#allocation5 + $0x390] sm:$0xff]
    %v251 = vld [vmem:[#allocation5 + $0x398] sm:$0xf]
    %v252 = vld [vmem:[#allocation5 + $0x39c] sm:$0xff]
    %v253 = vld [vmem:[#allocation5 + $0x3a4] sm:$0xf]
    %v254 = vld [vmem:[#allocation5 + $0x3a8] sm:$0xff]
    %v255 = vld [vmem:[#allocation5 + $0x3b0] sm:$0xf]
    %v256 = vld [vmem:[#allocation5 + $0x3b4] sm:$0xff]
    %v257 = vld [vmem:[#allocation5 + $0x3bc] sm:$0xf]
    %v258 = vld [vmem:[#allocation5 + $0x3c0] sm:$0xff]
    %v259 = vld [vmem:[#allocation5 + $0x3c8] sm:$0xf]
    %v260 = vld [vmem:[#allocation5 + $0x3cc] sm:$0xff]
    %v261 = vld [vmem:[#allocation5 + $0x3d4] sm:$0xf]
    %v262 = vld [vmem:[#allocation5 + $0x3d8] sm:$0xff]
    %v263 = vld [vmem:[#allocation5 + $0x3e0] sm:$0xf]
    %v264 = vld [vmem:[#allocation5 + $0x3e4] sm:$0xff]
    %v265 = vld [vmem:[#allocation5 + $0x3ec] sm:$0xf]
    %v266 = vld [vmem:[#allocation5 + $0x3f0] sm:$0xff]
    %v267 = vld [vmem:[#allocation5 + $0x3f8] sm:$0xf]
    %v268 = vld [vmem:[#allocation5 + $0x3fc] sm:$0xff]
    %v269 = vld [vmem:[#allocation5 + $0x404] sm:$0xf]
    %v270 = vld [vmem:[#allocation5 + $0x408] sm:$0xff]
    %v271 = vld [vmem:[#allocation5 + $0x410] sm:$0xf]
    %v272 = vld [vmem:[#allocation5 + $0x414] sm:$0xff]
    %v273 = vld [vmem:[#allocation5 + $0x41c] sm:$0xf]
    %v274 = vld [vmem:[#allocation5 + $0x420] sm:$0xff]
    %v275 = vld [vmem:[#allocation5 + $0x428] sm:$0xf]
    %v276 = vld [vmem:[#allocation5 + $0x42c] sm:$0xff]
    %v277 = vld [vmem:[#allocation5 + $0x434] sm:$0xf]
    %v278 = vld [vmem:[#allocation5 + $0x438] sm:$0xff]
    %v279 = vld [vmem:[#allocation5 + $0x440] sm:$0xf]
    %v280 = vld [vmem:[#allocation5 + $0x444] sm:$0xff]
    %v281 = vld [vmem:[#allocation5 + $0x44c] sm:$0xf]
    %v282 = vld [vmem:[#allocation5 + $0x450] sm:$0xff]
    %v283 = vld [vmem:[#allocation5 + $0x458] sm:$0xf]
    %v284 = vld [vmem:[#allocation5 + $0x45c] sm:$0xff]
    %v285 = vld [vmem:[#allocation5 + $0x464] sm:$0xf]
    %v286 = vld [vmem:[#allocation5 + $0x468] sm:$0xff]
    %v287 = vld [vmem:[#allocation5 + $0x470] sm:$0xf]
    %v288 = vld [vmem:[#allocation5 + $0x474] sm:$0xff]
    %v289 = vld [vmem:[#allocation5 + $0x47c] sm:$0xf]
    %v290 = vld [vmem:[#allocation5 + $0x480] sm:$0xff]
    %v291 = vld [vmem:[#allocation5 + $0x488] sm:$0xf]
    %v292 = vld [vmem:[#allocation5 + $0x48c] sm:$0xff]
    %v293 = vld [vmem:[#allocation5 + $0x494] sm:$0xf]
    %v294 = vld [vmem:[%s2] sm:$0x7]
    %v296 = vlaneseq
    %v297 = vshrl.u32 %v296, 7
    %v298 = vsub.s32 0, %v297
    %v299 = vrot.slane %v294, %v298
    %v300 = vlaneseq
    %v301 = vshrl.u32 %v300, 7
    %v302 = vsub.s32 1, %v301
    %v303 = vrot.slane %v294, %v302
    %v304 = vlaneseq
    %v305 = vshrl.u32 %v304, 7
    %v306 = vsub.s32 2, %v305
    %v307 = vrot.slane %v294, %v306
    %v507 = vunpack.c.l.b16 %v98
    %v508 = vunpack.c.h.b16 %v98
    %v509 = vunpack.c.l.b16 %v99
    %v510 = vunpack.c.l.b16 %v100
    %v511 = vunpack.c.h.b16 %v100
    %v512 = vunpack.c.l.b16 %v101
    %v513 = vunpack.c.l.b16 %v102
    %v514 = vunpack.c.h.b16 %v102
    %v515 = vunpack.c.l.b16 %v103
    %v516 = vunpack.c.l.b16 %v104
    %v517 = vunpack.c.h.b16 %v104
    %v518 = vunpack.c.l.b16 %v105
    %v519 = vunpack.c.l.b16 %v106
    %v520 = vunpack.c.h.b16 %v106
    %v521 = vunpack.c.l.b16 %v107
    %v522 = vunpack.c.l.b16 %v108
    %v523 = vunpack.c.h.b16 %v108
    %v524 = vunpack.c.l.b16 %v109
    %v525 = vunpack.c.l.b16 %v110
    %v526 = vunpack.c.h.b16 %v110
    %v527 = vunpack.c.l.b16 %v111
    %v528 = vunpack.c.l.b16 %v112
    %v529 = vunpack.c.h.b16 %v112
    %v530 = vunpack.c.l.b16 %v113
    %v531 = vunpack.c.l.b16 %v114
    %v532 = vunpack.c.h.b16 %v114
    %v533 = vunpack.c.l.b16 %v115
    %v534 = vunpack.c.l.b16 %v116
    %v535 = vunpack.c.h.b16 %v116
    %v536 = vunpack.c.l.b16 %v117
    %v537 = vunpack.c.l.b16 %v118
    %v538 = vunpack.c.h.b16 %v118
    %v539 = vunpack.c.l.b16 %v119
    %v540 = vunpack.c.l.b16 %v120
    %v541 = vunpack.c.h.b16 %v120
    %v542 = vunpack.c.l.b16 %v121
    %v543 = vunpack.c.l.b16 %v122
    %v544 = vunpack.c.h.b16 %v122
    %v545 = vunpack.c.l.b16 %v123
    %v546 = vunpack.c.l.b16 %v124
    %v547 = vunpack.c.h.b16 %v124
    %v548 = vunpack.c.l.b16 %v125
    %v549 = vunpack.c.l.b16 %v126
    %v550 = vunpack.c.h.b16 %v126
    %v551 = vunpack.c.l.b16 %v127
    %v552 = vunpack.c.l.b16 %v128
    %v553 = vunpack.c.h.b16 %v128
    %v554 = vunpack.c.l.b16 %v129
    %v555 = vunpack.c.l.b16 %v130
    %v556 = vunpack.c.h.b16 %v130
    %v557 = vunpack.c.l.b16 %v131
    %v558 = vunpack.c.l.b16 %v132
    %v559 = vunpack.c.h.b16 %v132
    %v560 = vunpack.c.l.b16 %v133
    %v561 = vunpack.c.l.b16 %v134
    %v562 = vunpack.c.h.b16 %v134
    %v563 = vunpack.c.l.b16 %v135
    %v564 = vunpack.c.l.b16 %v136
    %v565 = vunpack.c.h.b16 %v136
    %v566 = vunpack.c.l.b16 %v137
    %v567 = vunpack.c.l.b16 %v138
    %v568 = vunpack.c.h.b16 %v138
    %v569 = vunpack.c.l.b16 %v139
    %v570 = vunpack.c.l.b16 %v140
    %v571 = vunpack.c.h.b16 %v140
    %v572 = vunpack.c.l.b16 %v141
    %v573 = vunpack.c.l.b16 %v142
    %v574 = vunpack.c.h.b16 %v142
    %v575 = vunpack.c.l.b16 %v143
    %v576 = vunpack.c.l.b16 %v144
    %v577 = vunpack.c.h.b16 %v144
    %v578 = vunpack.c.l.b16 %v145
    %v579 = vunpack.c.l.b16 %v146
    %v580 = vunpack.c.h.b16 %v146
    %v581 = vunpack.c.l.b16 %v147
    %v582 = vunpack.c.l.b16 %v148
    %v583 = vunpack.c.h.b16 %v148
    %v584 = vunpack.c.l.b16 %v149
    %v585 = vunpack.c.l.b16 %v150
    %v586 = vunpack.c.h.b16 %v150
    %v587 = vunpack.c.l.b16 %v151
    %v588 = vunpack.c.l.b16 %v152
    %v589 = vunpack.c.h.b16 %v152
    %v590 = vunpack.c.l.b16 %v153
    %v591 = vunpack.c.l.b16 %v154
    %v592 = vunpack.c.h.b16 %v154
    %v593 = vunpack.c.l.b16 %v155
    %v594 = vunpack.c.l.b16 %v156
    %v595 = vunpack.c.h.b16 %v156
    %v596 = vunpack.c.l.b16 %v157
    %v597 = vunpack.c.l.b16 %v158
    %v598 = vunpack.c.h.b16 %v158
    %v599 = vunpack.c.l.b16 %v159
    %v600 = vunpack.c.l.b16 %v160
    %v601 = vunpack.c.h.b16 %v160
    %v602 = vunpack.c.l.b16 %v161
    %v603 = vunpack.c.l.b16 %v162
    %v604 = vunpack.c.h.b16 %v162
    %v605 = vunpack.c.l.b16 %v163
    %v606 = vunpack.c.l.b16 %v164
    %v607 = vunpack.c.h.b16 %v164
    %v608 = vunpack.c.l.b16 %v165
    %v609 = vunpack.c.l.b16 %v166
    %v610 = vunpack.c.h.b16 %v166
    %v611 = vunpack.c.l.b16 %v167
    %v612 = vunpack.c.l.b16 %v168
    %v613 = vunpack.c.h.b16 %v168
    %v614 = vunpack.c.l.b16 %v169
    %v615 = vunpack.c.l.b16 %v170
    %v616 = vunpack.c.h.b16 %v170
    %v617 = vunpack.c.l.b16 %v171
    %v618 = vunpack.c.l.b16 %v172
    %v619 = vunpack.c.h.b16 %v172
    %v620 = vunpack.c.l.b16 %v173
    %v621 = vunpack.c.l.b16 %v174
    %v622 = vunpack.c.h.b16 %v174
    %v623 = vunpack.c.l.b16 %v175
    %v624 = vunpack.c.l.b16 %v176
    %v625 = vunpack.c.h.b16 %v176
    %v626 = vunpack.c.l.b16 %v177
    %v627 = vunpack.c.l.b16 %v178
    %v628 = vunpack.c.h.b16 %v178
    %v629 = vunpack.c.l.b16 %v179
    %v630 = vunpack.c.l.b16 %v180
    %v631 = vunpack.c.h.b16 %v180
    %v632 = vunpack.c.l.b16 %v181
    %v633 = vunpack.c.l.b16 %v182
    %v634 = vunpack.c.h.b16 %v182
    %v635 = vunpack.c.l.b16 %v183
    %v636 = vunpack.c.l.b16 %v184
    %v637 = vunpack.c.h.b16 %v184
    %v638 = vunpack.c.l.b16 %v185
    %v639 = vunpack.c.l.b16 %v186
    %v640 = vunpack.c.h.b16 %v186
    %v641 = vunpack.c.l.b16 %v187
    %v642 = vunpack.c.l.b16 %v188
    %v643 = vunpack.c.h.b16 %v188
    %v644 = vunpack.c.l.b16 %v189
    %v645 = vunpack.c.l.b16 %v190
    %v646 = vunpack.c.h.b16 %v190
    %v647 = vunpack.c.l.b16 %v191
    %v648 = vunpack.c.l.b16 %v192
    %v649 = vunpack.c.h.b16 %v192
    %v650 = vunpack.c.l.b16 %v193
    %v651 = vunpack.c.l.b16 %v194
    %v652 = vunpack.c.h.b16 %v194
    %v653 = vunpack.c.l.b16 %v195
    %v654 = vunpack.c.l.b16 %v196
    %v655 = vunpack.c.h.b16 %v196
    %v656 = vunpack.c.l.b16 %v197
    %v657 = vunpack.c.l.b16 %v198
    %v658 = vunpack.c.h.b16 %v198
    %v659 = vunpack.c.l.b16 %v199
    %v660 = vunpack.c.l.b16 %v200
    %v661 = vunpack.c.h.b16 %v200
    %v662 = vunpack.c.l.b16 %v201
    %v663 = vunpack.c.l.b16 %v202
    %v664 = vunpack.c.h.b16 %v202
    %v665 = vunpack.c.l.b16 %v203
    %v666 = vunpack.c.l.b16 %v204
    %v667 = vunpack.c.h.b16 %v204
    %v668 = vunpack.c.l.b16 %v205
    %v669 = vunpack.c.l.b16 %v206
    %v670 = vunpack.c.h.b16 %v206
    %v671 = vunpack.c.l.b16 %v207
    %v672 = vunpack.c.l.b16 %v208
    %v673 = vunpack.c.h.b16 %v208
    %v674 = vunpack.c.l.b16 %v209
    %v675 = vunpack.c.l.b16 %v210
    %v676 = vunpack.c.h.b16 %v210
    %v677 = vunpack.c.l.b16 %v211
    %v678 = vunpack.c.l.b16 %v212
    %v679 = vunpack.c.h.b16 %v212
    %v680 = vunpack.c.l.b16 %v213
    %v681 = vunpack.c.l.b16 %v214
    %v682 = vunpack.c.h.b16 %v214
    %v683 = vunpack.c.l.b16 %v215
    %v684 = vunpack.c.l.b16 %v216
    %v685 = vunpack.c.h.b16 %v216
    %v686 = vunpack.c.l.b16 %v217
    %v687 = vunpack.c.l.b16 %v218
    %v688 = vunpack.c.h.b16 %v218
    %v689 = vunpack.c.l.b16 %v219
    %v690 = vunpack.c.l.b16 %v220
    %v691 = vunpack.c.h.b16 %v220
    %v692 = vunpack.c.l.b16 %v221
    %v693 = vunpack.c.l.b16 %v222
    %v694 = vunpack.c.h.b16 %v222
    %v695 = vunpack.c.l.b16 %v223
    %v696 = vunpack.c.l.b16 %v224
    %v697 = vunpack.c.h.b16 %v224
    %v698 = vunpack.c.l.b16 %v225
    %v699 = vunpack.c.l.b16 %v226
    %v700 = vunpack.c.h.b16 %v226
    %v701 = vunpack.c.l.b16 %v227
    %v702 = vunpack.c.l.b16 %v228
    %v703 = vunpack.c.h.b16 %v228
    %v704 = vunpack.c.l.b16 %v229
    %v705 = vunpack.c.l.b16 %v230
    %v706 = vunpack.c.h.b16 %v230
    %v707 = vunpack.c.l.b16 %v231
    %v708 = vunpack.c.l.b16 %v232
    %v709 = vunpack.c.h.b16 %v232
    %v710 = vunpack.c.l.b16 %v233
    %v711 = vunpack.c.l.b16 %v234
    %v712 = vunpack.c.h.b16 %v234
    %v713 = vunpack.c.l.b16 %v235
    %v714 = vunpack.c.l.b16 %v236
    %v715 = vunpack.c.h.b16 %v236
    %v716 = vunpack.c.l.b16 %v237
    %v717 = vunpack.c.l.b16 %v238
    %v718 = vunpack.c.h.b16 %v238
    %v719 = vunpack.c.l.b16 %v239
    %v720 = vunpack.c.l.b16 %v240
    %v721 = vunpack.c.h.b16 %v240
    %v722 = vunpack.c.l.b16 %v241
    %v723 = vunpack.c.l.b16 %v242
    %v724 = vunpack.c.h.b16 %v242
    %v725 = vunpack.c.l.b16 %v243
    %v726 = vunpack.c.l.b16 %v244
    %v727 = vunpack.c.h.b16 %v244
    %v728 = vunpack.c.l.b16 %v245
    %v729 = vunpack.c.l.b16 %v246
    %v730 = vunpack.c.h.b16 %v246
    %v731 = vunpack.c.l.b16 %v247
    %v732 = vunpack.c.l.b16 %v248
    %v733 = vunpack.c.h.b16 %v248
    %v734 = vunpack.c.l.b16 %v249
    %v735 = vunpack.c.l.b16 %v250
    %v736 = vunpack.c.h.b16 %v250
    %v737 = vunpack.c.l.b16 %v251
    %v738 = vunpack.c.l.b16 %v252
    %v739 = vunpack.c.h.b16 %v252
    %v740 = vunpack.c.l.b16 %v253
    %v741 = vunpack.c.l.b16 %v254
    %v742 = vunpack.c.h.b16 %v254
    %v743 = vunpack.c.l.b16 %v255
    %v744 = vunpack.c.l.b16 %v256
    %v745 = vunpack.c.h.b16 %v256
    %v746 = vunpack.c.l.b16 %v257
    %v747 = vunpack.c.l.b16 %v258
    %v748 = vunpack.c.h.b16 %v258
    %v749 = vunpack.c.l.b16 %v259
    %v750 = vunpack.c.l.b16 %v260
    %v751 = vunpack.c.h.b16 %v260
    %v752 = vunpack.c.l.b16 %v261
    %v753 = vunpack.c.l.b16 %v262
    %v754 = vunpack.c.h.b16 %v262
    %v755 = vunpack.c.l.b16 %v263
    %v756 = vunpack.c.l.b16 %v264
    %v757 = vunpack.c.h.b16 %v264
    %v758 = vunpack.c.l.b16 %v265
    %v759 = vunpack.c.l.b16 %v266
    %v760 = vunpack.c.h.b16 %v266
    %v761 = vunpack.c.l.b16 %v267
    %v762 = vunpack.c.l.b16 %v268
    %v763 = vunpack.c.h.b16 %v268
    %v764 = vunpack.c.l.b16 %v269
    %v765 = vunpack.c.l.b16 %v270
    %v766 = vunpack.c.h.b16 %v270
    %v767 = vunpack.c.l.b16 %v271
    %v768 = vunpack.c.l.b16 %v272
    %v769 = vunpack.c.h.b16 %v272
    %v770 = vunpack.c.l.b16 %v273
    %v771 = vunpack.c.l.b16 %v274
    %v772 = vunpack.c.h.b16 %v274
    %v773 = vunpack.c.l.b16 %v275
    %v774 = vunpack.c.l.b16 %v276
    %v775 = vunpack.c.h.b16 %v276
    %v776 = vunpack.c.l.b16 %v277
    %v777 = vunpack.c.l.b16 %v278
    %v778 = vunpack.c.h.b16 %v278
    %v779 = vunpack.c.l.b16 %v279
    %v780 = vunpack.c.l.b16 %v280
    %v781 = vunpack.c.h.b16 %v280
    %v782 = vunpack.c.l.b16 %v281
    %v783 = vunpack.c.l.b16 %v282
    %v784 = vunpack.c.h.b16 %v282
    %v785 = vunpack.c.l.b16 %v283
    %v786 = vunpack.c.l.b16 %v284
    %v787 = vunpack.c.h.b16 %v284
    %v788 = vunpack.c.l.b16 %v285
    %v789 = vunpack.c.l.b16 %v286
    %v790 = vunpack.c.h.b16 %v286
    %v791 = vunpack.c.l.b16 %v287
    %v792 = vunpack.c.l.b16 %v288
    %v793 = vunpack.c.h.b16 %v288
    %v794 = vunpack.c.l.b16 %v289
    %v795 = vunpack.c.l.b16 %v290
    %v796 = vunpack.c.h.b16 %v290
    %v797 = vunpack.c.l.b16 %v291
    %v798 = vunpack.c.l.b16 %v292
    %v799 = vunpack.c.h.b16 %v292
    %v800 = vunpack.c.l.b16 %v293
    %v801 = vpack.c.b16 %v510, %v507
    %v802 = vpack.c.b16 %v511, %v508
    %v803 = vpack.c.b16 %v512, %v509
    %v804 = vpack.c.b16 %v516, %v513
    %v805 = vpack.c.b16 %v517, %v514
    %v806 = vpack.c.b16 %v518, %v515
    %v807 = vpack.c.b16 %v522, %v519
    %v808 = vpack.c.b16 %v523, %v520
    %v809 = vpack.c.b16 %v524, %v521
    %v810 = vpack.c.b16 %v528, %v525
    %v811 = vpack.c.b16 %v529, %v526
    %v812 = vpack.c.b16 %v530, %v527
    %v813 = vpack.c.b16 %v534, %v531
    %v814 = vpack.c.b16 %v535, %v532
    %v815 = vpack.c.b16 %v536, %v533
    %v816 = vpack.c.b16 %v540, %v537
    %v817 = vpack.c.b16 %v541, %v538
    %v818 = vpack.c.b16 %v542, %v539
    %v819 = vpack.c.b16 %v546, %v543
    %v820 = vpack.c.b16 %v547, %v544
    %v821 = vpack.c.b16 %v548, %v545
    %v822 = vpack.c.b16 %v552, %v549
    %v823 = vpack.c.b16 %v553, %v550
    %v824 = vpack.c.b16 %v554, %v551
    %v825 = vpack.c.b16 %v558, %v555
    %v826 = vpack.c.b16 %v559, %v556
    %v827 = vpack.c.b16 %v560, %v557
    %v828 = vpack.c.b16 %v564, %v561
    %v829 = vpack.c.b16 %v565, %v562
    %v830 = vpack.c.b16 %v566, %v563
    %v831 = vpack.c.b16 %v570, %v567
    %v832 = vpack.c.b16 %v571, %v568
    %v833 = vpack.c.b16 %v572, %v569
    %v834 = vpack.c.b16 %v576, %v573
    %v835 = vpack.c.b16 %v577, %v574
    %v836 = vpack.c.b16 %v578, %v575
    %v837 = vpack.c.b16 %v582, %v579
    %v838 = vpack.c.b16 %v583, %v580
    %v839 = vpack.c.b16 %v584, %v581
    %v840 = vpack.c.b16 %v588, %v585
    %v841 = vpack.c.b16 %v589, %v586
    %v842 = vpack.c.b16 %v590, %v587
    %v843 = vpack.c.b16 %v594, %v591
    %v844 = vpack.c.b16 %v595, %v592
    %v845 = vpack.c.b16 %v596, %v593
    %v846 = vpack.c.b16 %v600, %v597
    %v847 = vpack.c.b16 %v601, %v598
    %v848 = vpack.c.b16 %v602, %v599
    %v849 = vpack.c.b16 %v606, %v603
    %v850 = vpack.c.b16 %v607, %v604
    %v851 = vpack.c.b16 %v608, %v605
    %v852 = vpack.c.b16 %v612, %v609
    %v853 = vpack.c.b16 %v613, %v610
    %v854 = vpack.c.b16 %v614, %v611
    %v855 = vpack.c.b16 %v618, %v615
    %v856 = vpack.c.b16 %v619, %v616
    %v857 = vpack.c.b16 %v620, %v617
    %v858 = vpack.c.b16 %v624, %v621
    %v859 = vpack.c.b16 %v625, %v622
    %v860 = vpack.c.b16 %v626, %v623
    %v861 = vpack.c.b16 %v630, %v627
    %v862 = vpack.c.b16 %v631, %v628
    %v863 = vpack.c.b16 %v632, %v629
    %v864 = vpack.c.b16 %v636, %v633
    %v865 = vpack.c.b16 %v637, %v634
    %v866 = vpack.c.b16 %v638, %v635
    %v867 = vpack.c.b16 %v642, %v639
    %v868 = vpack.c.b16 %v643, %v640
    %v869 = vpack.c.b16 %v644, %v641
    %v870 = vpack.c.b16 %v648, %v645
    %v871 = vpack.c.b16 %v649, %v646
    %v872 = vpack.c.b16 %v650, %v647
    %v873 = vpack.c.b16 %v654, %v651
    %v874 = vpack.c.b16 %v655, %v652
    %v875 = vpack.c.b16 %v656, %v653
    %v876 = vpack.c.b16 %v660, %v657
    %v877 = vpack.c.b16 %v661, %v658
    %v878 = vpack.c.b16 %v662, %v659
    %v879 = vpack.c.b16 %v666, %v663
    %v880 = vpack.c.b16 %v667, %v664
    %v881 = vpack.c.b16 %v668, %v665
    %v882 = vpack.c.b16 %v672, %v669
    %v883 = vpack.c.b16 %v673, %v670
    %v884 = vpack.c.b16 %v674, %v671
    %v885 = vpack.c.b16 %v678, %v675
    %v886 = vpack.c.b16 %v679, %v676
    %v887 = vpack.c.b16 %v680, %v677
    %v888 = vpack.c.b16 %v684, %v681
    %v889 = vpack.c.b16 %v685, %v682
    %v890 = vpack.c.b16 %v686, %v683
    %v891 = vpack.c.b16 %v690, %v687
    %v892 = vpack.c.b16 %v691, %v688
    %v893 = vpack.c.b16 %v692, %v689
    %v894 = vpack.c.b16 %v696, %v693
    %v895 = vpack.c.b16 %v697, %v694
    %v896 = vpack.c.b16 %v698, %v695
    %v897 = vpack.c.b16 %v702, %v699
    %v898 = vpack.c.b16 %v703, %v700
    %v899 = vpack.c.b16 %v704, %v701
    %v900 = vpack.c.b16 %v708, %v705
    %v901 = vpack.c.b16 %v709, %v706
    %v902 = vpack.c.b16 %v710, %v707
    %v903 = vpack.c.b16 %v714, %v711
    %v904 = vpack.c.b16 %v715, %v712
    %v905 = vpack.c.b16 %v716, %v713
    %v906 = vpack.c.b16 %v720, %v717
    %v907 = vpack.c.b16 %v721, %v718
    %v908 = vpack.c.b16 %v722, %v719
    %v909 = vpack.c.b16 %v726, %v723
    %v910 = vpack.c.b16 %v727, %v724
    %v911 = vpack.c.b16 %v728, %v725
    %v912 = vpack.c.b16 %v732, %v729
    %v913 = vpack.c.b16 %v733, %v730
    %v914 = vpack.c.b16 %v734, %v731
    %v915 = vpack.c.b16 %v738, %v735
    %v916 = vpack.c.b16 %v739, %v736
    %v917 = vpack.c.b16 %v740, %v737
    %v918 = vpack.c.b16 %v744, %v741
    %v919 = vpack.c.b16 %v745, %v742
    %v920 = vpack.c.b16 %v746, %v743
    %v921 = vpack.c.b16 %v750, %v747
    %v922 = vpack.c.b16 %v751, %v748
    %v923 = vpack.c.b16 %v752, %v749
    %v924 = vpack.c.b16 %v756, %v753
    %v925 = vpack.c.b16 %v757, %v754
    %v926 = vpack.c.b16 %v758, %v755
    %v927 = vpack.c.b16 %v762, %v759
    %v928 = vpack.c.b16 %v763, %v760
    %v929 = vpack.c.b16 %v764, %v761
    %v930 = vpack.c.b16 %v768, %v765
    %v931 = vpack.c.b16 %v769, %v766
    %v932 = vpack.c.b16 %v770, %v767
    %v933 = vpack.c.b16 %v774, %v771
    %v934 = vpack.c.b16 %v775, %v772
    %v935 = vpack.c.b16 %v776, %v773
    %v936 = vpack.c.b16 %v780, %v777
    %v937 = vpack.c.b16 %v781, %v778
    %v938 = vpack.c.b16 %v782, %v779
    %v939 = vpack.c.b16 %v786, %v783
    %v940 = vpack.c.b16 %v787, %v784
    %v941 = vpack.c.b16 %v788, %v785
    %v942 = vpack.c.b16 %v792, %v789
    %v943 = vpack.c.b16 %v793, %v790
    %v944 = vpack.c.b16 %v794, %v791
    %v945 = vpack.c.b16 %v798, %v795
    %v946 = vpack.c.b16 %v799, %v796
    %v947 = vpack.c.b16 %v800, %v797
    %vm1095 = vcmask 130048
    %v1097 = vsel %vm1095, %v97, 0
    %1099 = vmatprep.subr.bf16.mxu0 %v802
    %1100 = vmatpush1.bf16.msra.mxu0 %v801
    %1101 = vmatprep.subr.bf16.mxu0 %v805
    %1102 = vmatpush1.bf16.msra.mxu0 %v804
    %1103 = vmatprep.subr.bf16.mxu0 %v808
    %1104 = vmatpush1.bf16.msra.mxu0 %v807
    %1105 = vmatprep.subr.bf16.mxu0 %v811
    %1106 = vmatpush1.bf16.msra.mxu0 %v810
    %1107 = vmatprep.subr.bf16.mxu0 %v814
    %1108 = vmatpush1.bf16.msra.mxu0 %v813
    %1109 = vmatprep.subr.bf16.mxu0 %v817
    %1110 = vmatpush1.bf16.msra.mxu0 %v816
    %1111 = vmatprep.subr.bf16.mxu0 %v820
    %1112 = vmatpush1.bf16.msra.mxu0 %v819
    %1113 = vmatprep.subr.bf16.mxu0 %v823
    %1114 = vmatpush1.bf16.msra.mxu0 %v822
    %1115 = vmatprep.subr.bf16.mxu0 %v826
    %1116 = vmatpush1.bf16.msra.mxu0 %v825
    %1117 = vmatprep.subr.bf16.mxu0 %v829
    %1118 = vmatpush1.bf16.msra.mxu0 %v828
    %1119 = vmatprep.subr.bf16.mxu0 %v832
    %1120 = vmatpush1.bf16.msra.mxu0 %v831
    %1121 = vmatprep.subr.bf16.mxu0 %v835
    %1122 = vmatpush1.bf16.msra.mxu0 %v834
    %1123 = vmatprep.subr.bf16.mxu0 %v838
    %1124 = vmatpush1.bf16.msra.mxu0 %v837
    %1125 = vmatprep.subr.bf16.mxu0 %v841
    %1126 = vmatpush1.bf16.msra.mxu0 %v840
    %1127 = vmatprep.subr.bf16.mxu0 %v844
    %1128 = vmatpush1.bf16.msra.mxu0 %v843
    %1129 = vmatprep.subr.bf16.mxu0 %v847
    %1130 = vmatpush1.bf16.msra.mxu0 %v846
    %1131 = vmatprep.mubr.bf16.mxu0 %v92
    %1132 = vmatmul.mubr.bf16.gmra.mrb[0].mxu0 %v91
    %v1133 = vpop.f32.mrb[0].mxu0
    %v1134 = vadd.f32 %v299, %v1133
    %v1135 = vpop.f32.mrb[0].mxu0
    %v1136 = vadd.f32 %v303, %v1135
    %v1137 = vpop.f32.mrb[0].mxu0
    %v1138 = vpop.f32.mrb[0].mxu0
    %1139 = vdwg.mxu0
    %1140 = vmatprep.subr.bf16.mxu0 %v850
    %1141 = vmatpush1.bf16.msra.mxu0 %v849
    %1142 = vmatprep.subr.bf16.mxu0 %v853
    %1143 = vmatpush1.bf16.msra.mxu0 %v852
    %1144 = vmatprep.subr.bf16.mxu0 %v856
    %1145 = vmatpush1.bf16.msra.mxu0 %v855
    %1146 = vmatprep.subr.bf16.mxu0 %v859
    %1147 = vmatpush1.bf16.msra.mxu0 %v858
    %1148 = vmatprep.subr.bf16.mxu0 %v862
    %1149 = vmatpush1.bf16.msra.mxu0 %v861
    %1150 = vmatprep.subr.bf16.mxu0 %v865
    %1151 = vmatpush1.bf16.msra.mxu0 %v864
    %1152 = vmatprep.subr.bf16.mxu0 %v868
    %1153 = vmatpush1.bf16.msra.mxu0 %v867
    %1154 = vmatprep.subr.bf16.mxu0 %v871
    %1155 = vmatpush1.bf16.msra.mxu0 %v870
    %1156 = vmatprep.subr.bf16.mxu0 %v874
    %1157 = vmatpush1.bf16.msra.mxu0 %v873
    %1158 = vmatprep.subr.bf16.mxu0 %v877
    %1159 = vmatpush1.bf16.msra.mxu0 %v876
    %1160 = vmatprep.subr.bf16.mxu0 %v880
    %1161 = vmatpush1.bf16.msra.mxu0 %v879
    %1162 = vmatprep.subr.bf16.mxu0 %v883
    %1163 = vmatpush1.bf16.msra.mxu0 %v882
    %1164 = vmatprep.subr.bf16.mxu0 %v886
    %1165 = vmatpush1.bf16.msra.mxu0 %v885
    %1166 = vmatprep.subr.bf16.mxu0 %v889
    %1167 = vmatpush1.bf16.msra.mxu0 %v888
    %1168 = vmatprep.subr.bf16.mxu0 %v892
    %1169 = vmatpush1.bf16.msra.mxu0 %v891
    %1170 = vmatprep.subr.bf16.mxu0 %v895
    %1171 = vmatpush1.bf16.msra.mxu0 %v894
    %1172 = vmatprep.mubr.bf16.mxu0 %v94
    %1173 = vmatmul.mubr.bf16.gmra.mrb[0].mxu0 %v93
    %v1174 = vpop.f32.mrb[0].mxu0
    %v1175 = vadd.f32 %v1134, %v1174
    %v1176 = vpop.f32.mrb[0].mxu0
    %v1177 = vadd.f32 %v1136, %v1176
    %v1178 = vpop.f32.mrb[0].mxu0
    %v1179 = vpop.f32.mrb[0].mxu0
    %1180 = vdwg.mxu0
    %1181 = vmatprep.subr.bf16.mxu0 %v898
    %1182 = vmatpush1.bf16.msra.mxu0 %v897
    %1183 = vmatprep.subr.bf16.mxu0 %v901
    %1184 = vmatpush1.bf16.msra.mxu0 %v900
    %1185 = vmatprep.subr.bf16.mxu0 %v904
    %1186 = vmatpush1.bf16.msra.mxu0 %v903
    %1187 = vmatprep.subr.bf16.mxu0 %v907
    %1188 = vmatpush1.bf16.msra.mxu0 %v906
    %1189 = vmatprep.subr.bf16.mxu0 %v910
    %1190 = vmatpush1.bf16.msra.mxu0 %v909
    %1191 = vmatprep.subr.bf16.mxu0 %v913
    %1192 = vmatpush1.bf16.msra.mxu0 %v912
    %1193 = vmatprep.subr.bf16.mxu0 %v916
    %1194 = vmatpush1.bf16.msra.mxu0 %v915
    %1195 = vmatprep.subr.bf16.mxu0 %v919
    %1196 = vmatpush1.bf16.msra.mxu0 %v918
    %1197 = vmatprep.subr.bf16.mxu0 %v922
    %1198 = vmatpush1.bf16.msra.mxu0 %v921
    %1199 = vmatprep.subr.bf16.mxu0 %v925
    %1200 = vmatpush1.bf16.msra.mxu0 %v924
    %1201 = vmatprep.subr.bf16.mxu0 %v928
    %1202 = vmatpush1.bf16.msra.mxu0 %v927
    %1203 = vmatprep.subr.bf16.mxu0 %v931
    %1204 = vmatpush1.bf16.msra.mxu0 %v930
    %1205 = vmatprep.subr.bf16.mxu0 %v934
    %1206 = vmatpush1.bf16.msra.mxu0 %v933
    %1207 = vmatprep.subr.bf16.mxu0 %v937
    %1208 = vmatpush1.bf16.msra.mxu0 %v936
    %1209 = vmatprep.subr.bf16.mxu0 %v940
    %1210 = vmatpush1.bf16.msra.mxu0 %v939
    %1211 = vmatprep.subr.bf16.mxu0 %v943
    %1212 = vmatpush1.bf16.msra.mxu0 %v942
    %1213 = vmatprep.mubr.bf16.mxu0 %v96
    %1214 = vmatmul.mubr.bf16.gmra.mrb[0].mxu0 %v95
    %v1215 = vpop.f32.mrb[0].mxu0
    %v1216 = vadd.f32 %v1175, %v1215
    %v1217 = vpop.f32.mrb[0].mxu0
    %v1218 = vadd.f32 %v1177, %v1217
    %v1219 = vpop.f32.mrb[0].mxu0
    %v1220 = vpop.f32.mrb[0].mxu0
    %1221 = vdwg.mxu0
    %1222 = vmatprep.subr.bf16.mxu0 %v946
    %1223 = vmatpush1.bf16.msra.mxu0 %v945
    %1224 = vmatprep.subr.bf16.mxu0 0
    %1225 = vmatpush1.bf16.msra.mxu0 0
    %1226 = vmatprep.subr.bf16.mxu0 0
    %1227 = vmatpush1.bf16.msra.mxu0 0
    %1228 = vmatprep.subr.bf16.mxu0 0
    %1229 = vmatpush1.bf16.msra.mxu0 0
    %1230 = vmatprep.subr.bf16.mxu0 0
    %1231 = vmatpush1.bf16.msra.mxu0 0
    %1232 = vmatprep.subr.bf16.mxu0 0
    %1233 = vmatpush1.bf16.msra.mxu0 0
    %1234 = vmatprep.subr.bf16.mxu0 0
    %1235 = vmatpush1.bf16.msra.mxu0 0
    %1236 = vmatprep.subr.bf16.mxu0 0
    %1237 = vmatpush1.bf16.msra.mxu0 0
    %1238 = vmatprep.subr.bf16.mxu0 0
    %1239 = vmatpush1.bf16.msra.mxu0 0
    %1240 = vmatprep.subr.bf16.mxu0 0
    %1241 = vmatpush1.bf16.msra.mxu0 0
    %1242 = vmatprep.subr.bf16.mxu0 0
    %1243 = vmatpush1.bf16.msra.mxu0 0
    %1244 = vmatprep.subr.bf16.mxu0 0
    %1245 = vmatpush1.bf16.msra.mxu0 0
    %1246 = vmatprep.subr.bf16.mxu0 0
    %1247 = vmatpush1.bf16.msra.mxu0 0
    %1248 = vmatprep.subr.bf16.mxu0 0
    %1249 = vmatpush1.bf16.msra.mxu0 0
    %1250 = vmatprep.subr.bf16.mxu0 0
    %1251 = vmatpush1.bf16.msra.mxu0 0
    %1252 = vmatprep.subr.bf16.mxu0 0
    %1253 = vmatpush1.bf16.msra.mxu0 0
    %1254 = vmatprep.mubr.bf16.mxu0 0
    %1255 = vmatmul.mubr.bf16.gmra.mrb[0].mxu0 %v1097
    %v1256 = vpop.f32.mrb[0].mxu0
    %v1257 = vadd.f32 %v1216, %v1256
    %v1258 = vpop.f32.mrb[0].mxu0
    %v1259 = vadd.f32 %v1218, %v1258
    %v1260 = vpop.f32.mrb[0].mxu0
    %v1261 = vpop.f32.mrb[0].mxu0
    %1262 = vdwg.mxu0
    %1263 = vmatprep.subr.bf16.mxu0 0
    %1264 = vmatpush1.bf16.msra.mxu0 %v803
    %1265 = vmatprep.subr.bf16.mxu0 0
    %1266 = vmatpush1.bf16.msra.mxu0 %v806
    %1267 = vmatprep.subr.bf16.mxu0 0
    %1268 = vmatpush1.bf16.msra.mxu0 %v809
    %1269 = vmatprep.subr.bf16.mxu0 0
    %1270 = vmatpush1.bf16.msra.mxu0 %v812
    %1271 = vmatprep.subr.bf16.mxu0 0
    %1272 = vmatpush1.bf16.msra.mxu0 %v815
    %1273 = vmatprep.subr.bf16.mxu0 0
    %1274 = vmatpush1.bf16.msra.mxu0 %v818
    %1275 = vmatprep.subr.bf16.mxu0 0
    %1276 = vmatpush1.bf16.msra.mxu0 %v821
    %1277 = vmatprep.subr.bf16.mxu0 0
    %1278 = vmatpush1.bf16.msra.mxu0 %v824
    %1279 = vmatprep.subr.bf16.mxu0 0
    %1280 = vmatpush1.bf16.msra.mxu0 %v827
    %1281 = vmatprep.subr.bf16.mxu0 0
    %1282 = vmatpush1.bf16.msra.mxu0 %v830
    %1283 = vmatprep.subr.bf16.mxu0 0
    %1284 = vmatpush1.bf16.msra.mxu0 %v833
    %1285 = vmatprep.subr.bf16.mxu0 0
    %1286 = vmatpush1.bf16.msra.mxu0 %v836
    %1287 = vmatprep.subr.bf16.mxu0 0
    %1288 = vmatpush1.bf16.msra.mxu0 %v839
    %1289 = vmatprep.subr.bf16.mxu0 0
    %1290 = vmatpush1.bf16.msra.mxu0 %v842
    %1291 = vmatprep.subr.bf16.mxu0 0
    %1292 = vmatpush1.bf16.msra.mxu0 %v845
    %1293 = vmatprep.subr.bf16.mxu0 0
    %1294 = vmatpush1.bf16.msra.mxu0 %v848
    %1295 = vmatprep.mubr.bf16.mxu0 %v92
    %1296 = vmatmul.mubr.bf16.gmra.mrb[0].mxu0 %v91
    %v1297 = vpop.f32.mrb[0].mxu0
    %v1298 = vadd.f32 %v307, %v1297
    %v1299 = vpop.f32.mrb[0].mxu0
    %v1300 = vpop.f32.mrb[0].mxu0
    %v1301 = vpop.f32.mrb[0].mxu0
    %1302 = vdwg.mxu0
    %1303 = vmatprep.subr.bf16.mxu0 0
    %1304 = vmatpush1.bf16.msra.mxu0 %v851
    %1305 = vmatprep.subr.bf16.mxu0 0
    %1306 = vmatpush1.bf16.msra.mxu0 %v854
    %1307 = vmatprep.subr.bf16.mxu0 0
    %1308 = vmatpush1.bf16.msra.mxu0 %v857
    %1309 = vmatprep.subr.bf16.mxu0 0
    %1310 = vmatpush1.bf16.msra.mxu0 %v860
    %1311 = vmatprep.subr.bf16.mxu0 0
    %1312 = vmatpush1.bf16.msra.mxu0 %v863
    %1313 = vmatprep.subr.bf16.mxu0 0
    %1314 = vmatpush1.bf16.msra.mxu0 %v866
    %1315 = vmatprep.subr.bf16.mxu0 0
    %1316 = vmatpush1.bf16.msra.mxu0 %v869
    %1317 = vmatprep.subr.bf16.mxu0 0
    %1318 = vmatpush1.bf16.msra.mxu0 %v872
    %1319 = vmatprep.subr.bf16.mxu0 0
    %1320 = vmatpush1.bf16.msra.mxu0 %v875
    %1321 = vmatprep.subr.bf16.mxu0 0
    %1322 = vmatpush1.bf16.msra.mxu0 %v878
    %1323 = vmatprep.subr.bf16.mxu0 0
    %1324 = vmatpush1.bf16.msra.mxu0 %v881
    %1325 = vmatprep.subr.bf16.mxu0 0
    %1326 = vmatpush1.bf16.msra.mxu0 %v884
    %1327 = vmatprep.subr.bf16.mxu0 0
    %1328 = vmatpush1.bf16.msra.mxu0 %v887
    %1329 = vmatprep.subr.bf16.mxu0 0
    %1330 = vmatpush1.bf16.msra.mxu0 %v890
    %1331 = vmatprep.subr.bf16.mxu0 0
    %1332 = vmatpush1.bf16.msra.mxu0 %v893
    %1333 = vmatprep.subr.bf16.mxu0 0
    %1334 = vmatpush1.bf16.msra.mxu0 %v896
    %1335 = vmatprep.mubr.bf16.mxu0 %v94
    %1336 = vmatmul.mubr.bf16.gmra.mrb[0].mxu0 %v93
    %v1337 = vpop.f32.mrb[0].mxu0
    %v1338 = vadd.f32 %v1298, %v1337
    %v1339 = vpop.f32.mrb[0].mxu0
    %v1340 = vpop.f32.mrb[0].mxu0
    %v1341 = vpop.f32.mrb[0].mxu0
    %1342 = vdwg.mxu0
    %1343 = vmatprep.subr.bf16.mxu0 0
    %1344 = vmatpush1.bf16.msra.mxu0 %v899
    %1345 = vmatprep.subr.bf16.mxu0 0
    %1346 = vmatpush1.bf16.msra.mxu0 %v902
    %1347 = vmatprep.subr.bf16.mxu0 0
    %1348 = vmatpush1.bf16.msra.mxu0 %v905
    %1349 = vmatprep.subr.bf16.mxu0 0
    %1350 = vmatpush1.bf16.msra.mxu0 %v908
    %1351 = vmatprep.subr.bf16.mxu0 0
    %1352 = vmatpush1.bf16.msra.mxu0 %v911
    %1353 = vmatprep.subr.bf16.mxu0 0
    %1354 = vmatpush1.bf16.msra.mxu0 %v914
    %1355 = vmatprep.subr.bf16.mxu0 0
    %1356 = vmatpush1.bf16.msra.mxu0 %v917
    %1357 = vmatprep.subr.bf16.mxu0 0
    %1358 = vmatpush1.bf16.msra.mxu0 %v920
    %1359 = vmatprep.subr.bf16.mxu0 0
    %1360 = vmatpush1.bf16.msra.mxu0 %v923
    %1361 = vmatprep.subr.bf16.mxu0 0
    %1362 = vmatpush1.bf16.msra.mxu0 %v926
    %1363 = vmatprep.subr.bf16.mxu0 0
    %1364 = vmatpush1.bf16.msra.mxu0 %v929
    %1365 = vmatprep.subr.bf16.mxu0 0
    %1366 = vmatpush1.bf16.msra.mxu0 %v932
    %1367 = vmatprep.subr.bf16.mxu0 0
    %1368 = vmatpush1.bf16.msra.mxu0 %v935
    %1369 = vmatprep.subr.bf16.mxu0 0
    %1370 = vmatpush1.bf16.msra.mxu0 %v938
    %1371 = vmatprep.subr.bf16.mxu0 0
    %1372 = vmatpush1.bf16.msra.mxu0 %v941
    %1373 = vmatprep.subr.bf16.mxu0 0
    %1374 = vmatpush1.bf16.msra.mxu0 %v944
    %1375 = vmatprep.mubr.bf16.mxu0 %v96
    %1376 = vmatmul.mubr.bf16.gmra.mrb[0].mxu0 %v95
    %v1377 = vpop.f32.mrb[0].mxu0
    %v1378 = vadd.f32 %v1338, %v1377
    %v1379 = vpop.f32.mrb[0].mxu0
    %v1380 = vpop.f32.mrb[0].mxu0
    %v1381 = vpop.f32.mrb[0].mxu0
    %1382 = vdwg.mxu0
    %1383 = vmatprep.subr.bf16.mxu0 0
    %1384 = vmatpush1.bf16.msra.mxu0 %v947
    %1385 = vmatprep.subr.bf16.mxu0 0
    %1386 = vmatpush1.bf16.msra.mxu0 0
    %1387 = vmatprep.subr.bf16.mxu0 0
    %1388 = vmatpush1.bf16.msra.mxu0 0
    %1389 = vmatprep.subr.bf16.mxu0 0
    %1390 = vmatpush1.bf16.msra.mxu0 0
    %1391 = vmatprep.subr.bf16.mxu0 0
    %1392 = vmatpush1.bf16.msra.mxu0 0
    %1393 = vmatprep.subr.bf16.mxu0 0
    %1394 = vmatpush1.bf16.msra.mxu0 0
    %1395 = vmatprep.subr.bf16.mxu0 0
    %1396 = vmatpush1.bf16.msra.mxu0 0
    %1397 = vmatprep.subr.bf16.mxu0 0
    %1398 = vmatpush1.bf16.msra.mxu0 0
    %1399 = vmatprep.subr.bf16.mxu0 0
    %1400 = vmatpush1.bf16.msra.mxu0 0
    %1401 = vmatprep.subr.bf16.mxu0 0
    %1402 = vmatpush1.bf16.msra.mxu0 0
    %1403 = vmatprep.subr.bf16.mxu0 0
    %1404 = vmatpush1.bf16.msra.mxu0 0
    %1405 = vmatprep.subr.bf16.mxu0 0
    %1406 = vmatpush1.bf16.msra.mxu0 0
    %1407 = vmatprep.subr.bf16.mxu0 0
    %1408 = vmatpush1.bf16.msra.mxu0 0
    %1409 = vmatprep.subr.bf16.mxu0 0
    %1410 = vmatpush1.bf16.msra.mxu0 0
    %1411 = vmatprep.subr.bf16.mxu0 0
    %1412 = vmatpush1.bf16.msra.mxu0 0
    %1413 = vmatprep.subr.bf16.mxu0 0
    %1414 = vmatpush1.bf16.msra.mxu0 0
    %1415 = vmatprep.mubr.bf16.mxu0 0
    %1416 = vmatmul.mubr.bf16.gmra.mrb[0].mxu0 %v1097
    %v1417 = vpop.f32.mrb[0].mxu0
    %v1418 = vadd.f32 %v1378, %v1417
    %v1419 = vpop.f32.mrb[0].mxu0
    %v1420 = vpop.f32.mrb[0].mxu0
    %v1421 = vpop.f32.mrb[0].mxu0
    %1422 = vdwg.mxu0
    %v1423 = vmax.f32 %v1257, 0.0
    %v1424 = vmax.f32 %v1259, 0.0
    %v1425 = vmax.f32 %v1418, 0.0
    %v1426 = vpack.c.bf16 %v1423, %v1423
    %v1427 = vpack.c.bf16 %v1424, %v1424
    %v1428 = vpack.c.bf16 %v1425, %v1425
    %v1429 = vld [vmem:[#allocation7] sm:$0xf]
    %v1430 = vld [vmem:[#allocation7 + $0x4] sm:$0xf]
    %v1431 = vld [vmem:[#allocation7 + $0x8] sm:$0xf]
    %v1432 = vld [vmem:[#allocation7 + $0xc] sm:$0xf]
    %v1433 = vld [vmem:[#allocation7 + $0x10] sm:$0xf]
    %v1434 = vld [vmem:[#allocation7 + $0x14] sm:$0xf]
    %v1435 = vld [vmem:[#allocation7 + $0x18] sm:$0xf]
    %v1436 = vld [vmem:[#allocation7 + $0x1c] sm:$0xf]
    %v1437 = vld [vmem:[#allocation7 + $0x20] sm:$0xf]
    %v1438 = vld [vmem:[#allocation7 + $0x24] sm:$0xf]
    %v1439 = vld [vmem:[#allocation7 + $0x28] sm:$0xf]
    %v1440 = vld [vmem:[#allocation7 + $0x2c] sm:$0xf]
    %v1441 = vld [vmem:[#allocation7 + $0x30] sm:$0xf]
    %v1442 = vld [vmem:[#allocation7 + $0x34] sm:$0xf]
    %v1443 = vld [vmem:[#allocation7 + $0x38] sm:$0xf]
    %v1444 = vld [vmem:[#allocation7 + $0x3c] sm:$0xf]
    %v1445 = vld [vmem:[#allocation7 + $0x40] sm:$0xf]
    %v1446 = vld [vmem:[#allocation7 + $0x44] sm:$0xf]
    %v1447 = vld [vmem:[#allocation7 + $0x48] sm:$0xf]
    %v1448 = vld [vmem:[#allocation7 + $0x4c] sm:$0xf]
    %v1449 = vld [vmem:[#allocation7 + $0x50] sm:$0xf]
    %v1450 = vld [vmem:[#allocation7 + $0x54] sm:$0xf]
    %v1451 = vld [vmem:[#allocation7 + $0x58] sm:$0xf]
    %v1452 = vld [vmem:[#allocation7 + $0x5c] sm:$0xf]
    %v1453 = vld [vmem:[#allocation7 + $0x60] sm:$0xf]
    %v1454 = vld [vmem:[#allocation7 + $0x64] sm:$0xf]
    %v1455 = vld [vmem:[#allocation7 + $0x68] sm:$0xf]
    %v1456 = vld [vmem:[#allocation7 + $0x6c] sm:$0xf]
    %v1457 = vld [vmem:[#allocation7 + $0x70] sm:$0xf]
    %v1458 = vld [vmem:[#allocation7 + $0x74] sm:$0xf]
    %v1459 = vld [vmem:[#allocation7 + $0x78] sm:$0xf]
    %v1460 = vld [vmem:[#allocation7 + $0x7c] sm:$0xf]
    %v1461 = vld [vmem:[#allocation7 + $0x80] sm:$0xf]
    %v1462 = vld [vmem:[#allocation7 + $0x84] sm:$0xf]
    %v1463 = vld [vmem:[#allocation7 + $0x88] sm:$0xf]
    %v1464 = vld [vmem:[#allocation7 + $0x8c] sm:$0xf]
    %v1465 = vld [vmem:[#allocation7 + $0x90] sm:$0xf]
    %v1466 = vld [vmem:[#allocation7 + $0x94] sm:$0xf]
    %v1467 = vld [vmem:[#allocation7 + $0x98] sm:$0xf]
    %v1468 = vld [vmem:[#allocation7 + $0x9c] sm:$0xf]
    %v1469 = vld [vmem:[#allocation7 + $0xa0] sm:$0xf]
    %v1470 = vld [vmem:[#allocation7 + $0xa4] sm:$0xf]
    %v1471 = vld [vmem:[#allocation7 + $0xa8] sm:$0xf]
    %v1472 = vld [vmem:[#allocation7 + $0xac] sm:$0xf]
    %v1473 = vld [vmem:[#allocation7 + $0xb0] sm:$0xf]
    %v1474 = vld [vmem:[#allocation7 + $0xb4] sm:$0xf]
    %v1475 = vld [vmem:[#allocation7 + $0xb8] sm:$0xf]
    %v1476 = vld [vmem:[#allocation7 + $0xbc] sm:$0xf]
    %v1477 = vld [vmem:[%s4] sm:$0x1]
    %v1479 = vlaneseq
    %v1480 = vshrl.u32 %v1479, 7
    %v1481 = vsub.s32 0, %v1480
    %v1482 = vrot.slane %v1477, %v1481
    %v1532 = vunpack.c.l.b16 %v1429
    %v1533 = vunpack.c.l.b16 %v1430
    %v1534 = vunpack.c.l.b16 %v1431
    %v1535 = vunpack.c.l.b16 %v1432
    %v1536 = vunpack.c.l.b16 %v1433
    %v1537 = vunpack.c.l.b16 %v1434
    %v1538 = vunpack.c.l.b16 %v1435
    %v1539 = vunpack.c.l.b16 %v1436
    %v1540 = vunpack.c.l.b16 %v1437
    %v1541 = vunpack.c.l.b16 %v1438
    %v1542 = vunpack.c.l.b16 %v1439
    %v1543 = vunpack.c.l.b16 %v1440
    %v1544 = vunpack.c.l.b16 %v1441
    %v1545 = vunpack.c.l.b16 %v1442
    %v1546 = vunpack.c.l.b16 %v1443
    %v1547 = vunpack.c.l.b16 %v1444
    %v1548 = vunpack.c.l.b16 %v1445
    %v1549 = vunpack.c.l.b16 %v1446
    %v1550 = vunpack.c.l.b16 %v1447
    %v1551 = vunpack.c.l.b16 %v1448
    %v1552 = vunpack.c.l.b16 %v1449
    %v1553 = vunpack.c.l.b16 %v1450
    %v1554 = vunpack.c.l.b16 %v1451
    %v1555 = vunpack.c.l.b16 %v1452
    %v1556 = vunpack.c.l.b16 %v1453
    %v1557 = vunpack.c.l.b16 %v1454
    %v1558 = vunpack.c.l.b16 %v1455
    %v1559 = vunpack.c.l.b16 %v1456
    %v1560 = vunpack.c.l.b16 %v1457
    %v1561 = vunpack.c.l.b16 %v1458
    %v1562 = vunpack.c.l.b16 %v1459
    %v1563 = vunpack.c.l.b16 %v1460
    %v1564 = vunpack.c.l.b16 %v1461
    %v1565 = vunpack.c.l.b16 %v1462
    %v1566 = vunpack.c.l.b16 %v1463
    %v1567 = vunpack.c.l.b16 %v1464
    %v1568 = vunpack.c.l.b16 %v1465
    %v1569 = vunpack.c.l.b16 %v1466
    %v1570 = vunpack.c.l.b16 %v1467
    %v1571 = vunpack.c.l.b16 %v1468
    %v1572 = vunpack.c.l.b16 %v1469
    %v1573 = vunpack.c.l.b16 %v1470
    %v1574 = vunpack.c.l.b16 %v1471
    %v1575 = vunpack.c.l.b16 %v1472
    %v1576 = vunpack.c.l.b16 %v1473
    %v1577 = vunpack.c.l.b16 %v1474
    %v1578 = vunpack.c.l.b16 %v1475
    %v1579 = vunpack.c.l.b16 %v1476
    %v1580 = vpack.c.b16 %v1533, %v1532
    %v1581 = vpack.c.b16 %v1535, %v1534
    %v1582 = vpack.c.b16 %v1537, %v1536
    %v1583 = vpack.c.b16 %v1539, %v1538
    %v1584 = vpack.c.b16 %v1541, %v1540
    %v1585 = vpack.c.b16 %v1543, %v1542
    %v1586 = vpack.c.b16 %v1545, %v1544
    %v1587 = vpack.c.b16 %v1547, %v1546
    %v1588 = vpack.c.b16 %v1549, %v1548
    %v1589 = vpack.c.b16 %v1551, %v1550
    %v1590 = vpack.c.b16 %v1553, %v1552
    %v1591 = vpack.c.b16 %v1555, %v1554
    %v1592 = vpack.c.b16 %v1557, %v1556
    %v1593 = vpack.c.b16 %v1559, %v1558
    %v1594 = vpack.c.b16 %v1561, %v1560
    %v1595 = vpack.c.b16 %v1563, %v1562
    %v1596 = vpack.c.b16 %v1565, %v1564
    %v1597 = vpack.c.b16 %v1567, %v1566
    %v1598 = vpack.c.b16 %v1569, %v1568
    %v1599 = vpack.c.b16 %v1571, %v1570
    %v1600 = vpack.c.b16 %v1573, %v1572
    %v1601 = vpack.c.b16 %v1575, %v1574
    %v1602 = vpack.c.b16 %v1577, %v1576
    %v1603 = vpack.c.b16 %v1579, %v1578
    %1628 = vmatprep.subr.bf16.mxu0 0
    %1629 = vmatpush1.bf16.msra.mxu0 %v1580
    %1630 = vmatprep.subr.bf16.mxu0 0
    %1631 = vmatpush1.bf16.msra.mxu0 %v1581
    %1632 = vmatprep.subr.bf16.mxu0 0
    %1633 = vmatpush1.bf16.msra.mxu0 %v1582
    %1634 = vmatprep.subr.bf16.mxu0 0
    %1635 = vmatpush1.bf16.msra.mxu0 %v1583
    %1636 = vmatprep.subr.bf16.mxu0 0
    %1637 = vmatpush1.bf16.msra.mxu0 %v1584
    %1638 = vmatprep.subr.bf16.mxu0 0
    %1639 = vmatpush1.bf16.msra.mxu0 %v1585
    %1640 = vmatprep.subr.bf16.mxu0 0
    %1641 = vmatpush1.bf16.msra.mxu0 %v1586
    %1642 = vmatprep.subr.bf16.mxu0 0
    %1643 = vmatpush1.bf16.msra.mxu0 %v1587
    %1644 = vmatprep.subr.bf16.mxu0 0
    %1645 = vmatpush1.bf16.msra.mxu0 %v1588
    %1646 = vmatprep.subr.bf16.mxu0 0
    %1647 = vmatpush1.bf16.msra.mxu0 %v1589
    %1648 = vmatprep.subr.bf16.mxu0 0
    %1649 = vmatpush1.bf16.msra.mxu0 %v1590
    %1650 = vmatprep.subr.bf16.mxu0 0
    %1651 = vmatpush1.bf16.msra.mxu0 %v1591
    %1652 = vmatprep.subr.bf16.mxu0 0
    %1653 = vmatpush1.bf16.msra.mxu0 %v1592
    %1654 = vmatprep.subr.bf16.mxu0 0
    %1655 = vmatpush1.bf16.msra.mxu0 %v1593
    %1656 = vmatprep.subr.bf16.mxu0 0
    %1657 = vmatpush1.bf16.msra.mxu0 %v1594
    %1658 = vmatprep.subr.bf16.mxu0 0
    %1659 = vmatpush1.bf16.msra.mxu0 %v1595
    %1660 = vmatprep.mubr.bf16.mxu0 %v1427
    %1661 = vmatmul.mubr.bf16.gmra.mrb[0].mxu0 %v1426
    %v1662 = vpop.f32.mrb[0].mxu0
    %v1663 = vadd.f32 %v1482, %v1662
    %v1664 = vpop.f32.mrb[0].mxu0
    %v1665 = vpop.f32.mrb[0].mxu0
    %v1666 = vpop.f32.mrb[0].mxu0
    %1667 = vdwg.mxu0
    %1668 = vmatprep.subr.bf16.mxu0 0
    %1669 = vmatpush1.bf16.msra.mxu0 %v1596
    %1670 = vmatprep.subr.bf16.mxu0 0
    %1671 = vmatpush1.bf16.msra.mxu0 %v1597
    %1672 = vmatprep.subr.bf16.mxu0 0
    %1673 = vmatpush1.bf16.msra.mxu0 %v1598
    %1674 = vmatprep.subr.bf16.mxu0 0
    %1675 = vmatpush1.bf16.msra.mxu0 %v1599
    %1676 = vmatprep.subr.bf16.mxu0 0
    %1677 = vmatpush1.bf16.msra.mxu0 %v1600
    %1678 = vmatprep.subr.bf16.mxu0 0
    %1679 = vmatpush1.bf16.msra.mxu0 %v1601
    %1680 = vmatprep.subr.bf16.mxu0 0
    %1681 = vmatpush1.bf16.msra.mxu0 %v1602
    %1682 = vmatprep.subr.bf16.mxu0 0
    %1683 = vmatpush1.bf16.msra.mxu0 %v1603
    %1684 = vmatprep.subr.bf16.mxu0 0
    %1685 = vmatpush1.bf16.msra.mxu0 0
    %1686 = vmatprep.subr.bf16.mxu0 0
    %1687 = vmatpush1.bf16.msra.mxu0 0
    %1688 = vmatprep.subr.bf16.mxu0 0
    %1689 = vmatpush1.bf16.msra.mxu0 0
    %1690 = vmatprep.subr.bf16.mxu0 0
    %1691 = vmatpush1.bf16.msra.mxu0 0
    %1692 = vmatprep.subr.bf16.mxu0 0
    %1693 = vmatpush1.bf16.msra.mxu0 0
    %1694 = vmatprep.subr.bf16.mxu0 0
    %1695 = vmatpush1.bf16.msra.mxu0 0
    %1696 = vmatprep.subr.bf16.mxu0 0
    %1697 = vmatpush1.bf16.msra.mxu0 0
    %1698 = vmatprep.subr.bf16.mxu0 0
    %1699 = vmatpush1.bf16.msra.mxu0 0
    %1700 = vmatprep.mubr.bf16.mxu0 0
    %1701 = vmatmul.mubr.bf16.gmra.mrb[0].mxu0 %v1428
    %v1702 = vpop.f32.mrb[0].mxu0
    %v1703 = vadd.f32 %v1663, %v1702
    %v1704 = vpop.f32.mrb[0].mxu0
    %v1705 = vpop.f32.mrb[0].mxu0
    %v1706 = vpop.f32.mrb[0].mxu0
    %1707 = vdwg.mxu0
    %v1708 = vmax.f32 %v1703, 0.0
    %v1709 = vpack.c.bf16 %v1708, %v1708
    %v1710 = vld [vmem:[#allocation8] sm:$0xf]
    %v1711 = vld [vmem:[#allocation8 + $0x4] sm:$0xf]
    %v1712 = vld [vmem:[#allocation8 + $0x8] sm:$0xf]
    %v1713 = vld [vmem:[#allocation8 + $0xc] sm:$0xf]
    %v1714 = vld [vmem:[#allocation8 + $0x10] sm:$0xf]
    %v1715 = vld [vmem:[#allocation8 + $0x14] sm:$0xf]
    %v1716 = vld [vmem:[#allocation8 + $0x18] sm:$0xf]
    %v1717 = vld [vmem:[#allocation8 + $0x1c] sm:$0xf]
    %v1718 = vld [vmem:[#allocation8 + $0x20] sm:$0xf]
    %v1719 = vld [vmem:[#allocation8 + $0x24] sm:$0xf]
    %v1720 = vld [vmem:[#allocation8 + $0x28] sm:$0xf]
    %v1721 = vld [vmem:[#allocation8 + $0x2c] sm:$0xf]
    %v1722 = vld [vmem:[#allocation8 + $0x30] sm:$0xf]
    %v1723 = vld [vmem:[#allocation8 + $0x34] sm:$0xf]
    %v1724 = vld [vmem:[#allocation8 + $0x38] sm:$0xf]
    %v1725 = vld [vmem:[#allocation8 + $0x3c] sm:$0xf]
    %v1726 = vld [vmem:[%s6] sm:$0x1]
    %v1728 = vlaneseq
    %v1729 = vshrl.u32 %v1728, 7
    %v1730 = vsub.s32 0, %v1729
    %v1731 = vrot.slane %v1726, %v1730
    %v1749 = vunpack.c.l.b16 %v1710
    %v1750 = vunpack.c.l.b16 %v1711
    %v1751 = vunpack.c.l.b16 %v1712
    %v1752 = vunpack.c.l.b16 %v1713
    %v1753 = vunpack.c.l.b16 %v1714
    %v1754 = vunpack.c.l.b16 %v1715
    %v1755 = vunpack.c.l.b16 %v1716
    %v1756 = vunpack.c.l.b16 %v1717
    %v1757 = vunpack.c.l.b16 %v1718
    %v1758 = vunpack.c.l.b16 %v1719
    %v1759 = vunpack.c.l.b16 %v1720
    %v1760 = vunpack.c.l.b16 %v1721
    %v1761 = vunpack.c.l.b16 %v1722
    %v1762 = vunpack.c.l.b16 %v1723
    %v1763 = vunpack.c.l.b16 %v1724
    %v1764 = vunpack.c.l.b16 %v1725
    %v1765 = vpack.c.b16 %v1750, %v1749
    %v1766 = vpack.c.b16 %v1752, %v1751
    %v1767 = vpack.c.b16 %v1754, %v1753
    %v1768 = vpack.c.b16 %v1756, %v1755
    %v1769 = vpack.c.b16 %v1758, %v1757
    %v1770 = vpack.c.b16 %v1760, %v1759
    %v1771 = vpack.c.b16 %v1762, %v1761
    %v1772 = vpack.c.b16 %v1764, %v1763
    %1781 = vmatprep.subr.bf16.mxu0 0
    %1782 = vmatpush1.bf16.msra.mxu0 %v1765
    %1783 = vmatprep.subr.bf16.mxu0 0
    %1784 = vmatpush1.bf16.msra.mxu0 %v1766
    %1785 = vmatprep.subr.bf16.mxu0 0
    %1786 = vmatpush1.bf16.msra.mxu0 %v1767
    %1787 = vmatprep.subr.bf16.mxu0 0
    %1788 = vmatpush1.bf16.msra.mxu0 %v1768
    %1789 = vmatprep.subr.bf16.mxu0 0
    %1790 = vmatpush1.bf16.msra.mxu0 %v1769
    %1791 = vmatprep.subr.bf16.mxu0 0
    %1792 = vmatpush1.bf16.msra.mxu0 %v1770
    %1793 = vmatprep.subr.bf16.mxu0 0
    %1794 = vmatpush1.bf16.msra.mxu0 %v1771
    %1795 = vmatprep.subr.bf16.mxu0 0
    %1796 = vmatpush1.bf16.msra.mxu0 %v1772
    %1797 = vmatprep.subr.bf16.mxu0 0
    %1798 = vmatpush1.bf16.msra.mxu0 0
    %1799 = vmatprep.subr.bf16.mxu0 0
    %1800 = vmatpush1.bf16.msra.mxu0 0
    %1801 = vmatprep.subr.bf16.mxu0 0
    %1802 = vmatpush1.bf16.msra.mxu0 0
    %1803 = vmatprep.subr.bf16.mxu0 0
    %1804 = vmatpush1.bf16.msra.mxu0 0
    %1805 = vmatprep.subr.bf16.mxu0 0
    %1806 = vmatpush1.bf16.msra.mxu0 0
    %1807 = vmatprep.subr.bf16.mxu0 0
    %1808 = vmatpush1.bf16.msra.mxu0 0
    %1809 = vmatprep.subr.bf16.mxu0 0
    %1810 = vmatpush1.bf16.msra.mxu0 0
    %1811 = vmatprep.subr.bf16.mxu0 0
    %1812 = vmatpush1.bf16.msra.mxu0 0
    %1813 = vmatprep.mubr.bf16.mxu0 0
    %1814 = vmatmul.mubr.bf16.gmra.mrb[0].mxu0 %v1709
    %v1815 = vpop.f32.mrb[0].mxu0
    %v1816 = vadd.f32 %v1731, %v1815
    %v1817 = vpop.f32.mrb[0].mxu0
    %v1818 = vpop.f32.mrb[0].mxu0
    %v1819 = vpop.f32.mrb[0].mxu0
    %1820 = vdwg.mxu0
    %v1821 = vmax.f32 %v1816, 0.0
    %v1822 = vld [vmem:[%s7] sm:$0x1]
    %v1824 = vlaneseq
    %v1825 = vshrl.u32 %v1824, 7
    %v1826 = vsub.s32 0, %v1825
    %v1827 = vrot.slane %v1822, %v1826
    %v1829 = vadd.f32 %v1821, %v1827
    %1830 = vmax.xlane.f32.xlu0 %v1829
    %v1831 = vpop.xlane.xlu0 %1830
    %v1832 = vsub.f32 %v1829, %v1831
    %v1833 = vmul.f32 %v1832, 1.442695
    %v1834 = vpow.pop %v1833
    %1835 = vadd.xlane.f32.xlu0 %v1834
    %v1836 = vpop.xlane.xlu0 %1835
    %v1837 = vlog2.pop %v1836
    %v1838 = vmul.f32 %v1837, 0.6931472
    %v1839 = vsub.f32 %v1832, %v1838
    %1840 = vst [vmem:[#allocation10] sm:$0xff] %v1839
    // Predicated region
    $region50: #{tpu_custom_call.1} parent=1 // pred_check
      _
    $region51: #{tpu_custom_call.1} parent=1 // pred_check_branch
      %1842 = sbr.rel (0) target = $region53
    $region52: #{tpu_custom_call.1} parent=1 // pred_region
      %s1844 = ssub.s32 128, 128
      %1845 = vsyncadd [#allocation4], %s1844
      %s1847 = sshll.u32 [#allocation10], 4
      %s1848 = int_to_ptr.vmem [resolvable:$true] %s1847
      %1850 = dma.vmem_to_hbm [thread:$0]  %s1848, 128, %s8, [#allocation4]
    $region53: #{tpu_custom_call.1} parent=1 // pred_fallthru
      _
    // Predicated region
    $region54: #{tpu_custom_call.1} parent=1 // pred_check
      _
    $region55: #{tpu_custom_call.1} parent=1 // pred_check_branch
      %1852 = sbr.rel (0) target = $region57
    $region56: #{tpu_custom_call.1} parent=1 // pred_region
      %1853 = dma.done [#allocation4], 128
    $region57: #{tpu_custom_call.1} parent=1 // pred_fallthru
      _
    %1854 = vsyncpa [#allocation3], 1
    %1855 = vsyncpa [#allocation6], 1
    %1856 = vsyncpa [#allocation9], 1
    %1857 = vsyncpa [#allocation4], 1

</llo_original>
